<compile_context>
chip_gen: v7x
topology: tpu7x:2x2x1
jax: 0.10.0
libtpu: 0.0.40
codegen_flags: <defaults>
</compile_context>

<pallas_src>
import math
import functools

import jax
import jax.numpy as jnp
from jax.experimental import pallas as pl
from jax.experimental.pallas import tpu as pltpu


_VMEM_LIMIT = 32 * 1024 * 1024   # explicit scoped-VMEM budget; safe on v5e/v6e/v7x


# ----------------------------------------------------------------------------
# In-kernel helpers (constants built from 2-D iotas; conv as one MXU matmul)
# ----------------------------------------------------------------------------

def _sel_downsample(lout, lin):
    """(lout, lin) 0/1 matrix selecting stride-1 conv positions 0,2,4,... (=> stride-2 conv)."""
    r = jax.lax.broadcasted_iota(jnp.int32, (lout, lin), 0)
    c = jax.lax.broadcasted_iota(jnp.int32, (lout, lin), 1)
    return (c == 2 * r).astype(jnp.float32)


def _sel_upsample2(lin):
    """(2*lin, lin) 0/1 matrix for nearest x2 upsampling (output row j reads source row j//2)."""
    r = jax.lax.broadcasted_iota(jnp.int32, (2 * lin, lin), 0)
    c = jax.lax.broadcasted_iota(jnp.int32, (2 * lin, lin), 1)
    return ((r == 2 * c) | (r == 2 * c + 1)).astype(jnp.float32)


def _sel_resize(lout, lin):
    """(lout, lin) 0/1 matrix for nearest resize: row i reads source row floor(i*lin/lout)."""
    r = jax.lax.broadcasted_iota(jnp.int32, (lout, lin), 0)
    c = jax.lax.broadcasted_iota(jnp.int32, (lout, lin), 1)
    rl = r * lin
    return ((c * lout <= rl) & (rl < (c + 1) * lout)).astype(jnp.float32)


def _conv_bn_relu(x, w_ref, shift_ref, row_select=None):
    """Conv1d(K=3, pad=1) + folded BN(eval) + ReLU on a channels-last value.

    x:          (Lin, Cin) f32 activation value.
    w_ref:      (3*Cin, Cout) bf16 tap-major weights with the BN scale folded in.
    shift_ref:  (1, Cout) f32 folded conv-bias + BN shift.
    row_select: optional (Lout, Lin) 0/1 selector applied to the tap-concat rows
                (stride-2 downsample) before the single MXU weight matmul.
    """
    lin, cin = x.shape
    zero = jnp.zeros((1, cin), x.dtype)
    xp = jnp.concatenate([zero, x, zero], axis=0)                         # pad=1 on length axis
    xt = jnp.concatenate([xp[0:lin], xp[1:lin + 1], xp[2:lin + 2]],
                         axis=-1)                                         # (Lin, 3*Cin)
    if row_select is not None:
        xt = jnp.dot(row_select, xt, preferred_element_type=jnp.float32)  # stride-2 selection
    y = jnp.dot(xt.astype(jnp.bfloat16), w_ref[...],
                preferred_element_type=jnp.float32)                       # one MXU matmul
    return jnp.maximum(y + shift_ref[...], 0.0)                           # BN shift + ReLU (f32)


# ----------------------------------------------------------------------------
# Fused kernel: encoder -> decoder (+skips) -> attention, one batch sample per grid step
# ----------------------------------------------------------------------------

def _fused_kernel(x_ref, q_ref,
                  ew0, eb0, ew1, eb1, ew2, eb2, ew3, eb3,
                  dw0, db0, dw1, db1, dw2, db2, dw3, db3,
                  vecs_ref, scores_ref, *, l_size, scale):
    x = x_ref[...]                                    # (L, E) channels-last; also v for attention
    enc = ((ew0, eb0), (ew1, eb1), (ew2, eb2), (ew3, eb3))
    dec = ((dw0, db0), (dw1, db1), (dw2, db2), (dw3, db3))

    # encoder: 4 x [Conv1d(k=3, s=2, p=1) + BN + ReLU]
    k = x
    feats = []
    for w_ref, b_ref in enc:
        lin = k.shape[0]
        lout = (lin - 1) // 2 + 1
        k = _conv_bn_relu(k, w_ref, b_ref, row_select=_sel_downsample(lout, lin))
        feats.append(k)

    # decoder: 3 x [nearest x2 upsample + Conv1d(k=3, s=1, p=1) + BN + ReLU] + U-Net skip add
    for i in range(len(dec) - 1):
        w_ref, b_ref = dec[i]
        lin = k.shape[0]
        if lin == 1:
            k_up = jnp.concatenate([k, k], axis=0)    # x2 nearest of a single row
        else:
            k_up = jnp.dot(_sel_upsample2(lin), k, preferred_element_type=jnp.float32)
        k = _conv_bn_relu(k_up, w_ref, b_ref) + feats[len(dec) - 2 - i]

    # last decoder: nearest resize to size=l + Conv1d(k=3, s=1, p=1) + BN + ReLU
    w_ref, b_ref = dec[-1]
    k_rs = jnp.dot(_sel_resize(l_size, k.shape[0]), k, preferred_element_type=jnp.float32)
    k = _conv_bn_relu(k_rs, w_ref, b_ref)             # (l, E)

    # attention: softmax(q @ k^T / sqrt(E)) @ v   (all f32, exact normalisation)
    q = q_ref[...]                                    # (T, E), batch-invariant, precomputed
    s = jax.lax.dot_general(q, k, (((1,), (1,)), ((), ())),
                            preferred_element_type=jnp.float32) * scale   # (T, l)
    m = jnp.max(s, axis=-1, keepdims=True)
    e = jnp.exp(s - m)
    p = e / jnp.sum(e, axis=-1, keepdims=True)        # rows sum to 1 exactly (no approx recip)
    scores_ref[...] = p
    vecs_ref[...] = jnp.dot(p, x, preferred_element_type=jnp.float32)


def position_attention_forward(x, prep, *, l_size):
    """x: (N, E, L).  Returns (attn_vecs (N, T, E), attn_scores (N, T, l))."""
    N, E, L = x.shape
    q = prep["q"]
    T = q.shape[0]
    # Channels-last so the lane axis carries channels for every matmul; this transpose is the
    # only XLA glue op left in the forward.
    x_cl = jnp.transpose(x, (0, 2, 1))

    weights = []
    for w, b in prep["enc"] + prep["dec"]:
        weights += [w, b]

    def const_spec(a):
        nd = a.ndim
        return pl.BlockSpec(a.shape, lambda n: (0,) * nd)

    kernel = functools.partial(_fused_kernel, l_size=l_size, scale=1.0 / math.sqrt(E))

    vecs, scores = pl.pallas_call(
        kernel,
        out_shape=(jax.ShapeDtypeStruct((N, T, E), jnp.float32),
                   jax.ShapeDtypeStruct((N, T, l_size), jnp.float32)),
        grid=(N,),
        in_specs=[pl.BlockSpec((None, L, E), lambda n: (n, 0, 0)), const_spec(q)]
                 + [const_spec(a) for a in weights],
        out_specs=(pl.BlockSpec((None, T, E), lambda n: (n, 0, 0)),
                   pl.BlockSpec((None, T, l_size), lambda n: (n, 0, 0))),
        compiler_params=pltpu.CompilerParams(
            dimension_semantics=("parallel",),        # >=2 steps: both v7x TCs get work
            vmem_limit_bytes=_VMEM_LIMIT),
    )(x_cl, q, *weights)
    return vecs, scores


# ----------------------------------------------------------------------------
# One-time parameter preparation (hoisted out of the jitted forward)
# ----------------------------------------------------------------------------

def prepare_params(params, *, max_length, eps=1e-5):
    """Fold conv bias + BN(eval) into tap-major bf16 weights + f32 shift, and precompute
    the batch-invariant q = project(pos_encoding).  Runs once, outside jit."""
    def fold(p):
        w, b, gamma, beta, mean, var = p                      # w: (Cout, Cin, K)
        s = gamma / jnp.sqrt(var + eps)
        wcat = (jnp.transpose(w, (2, 1, 0)) * s).reshape(-1, w.shape[0])   # (3*Cin, Cout)
        shift = ((b - mean) * s + beta).reshape(1, -1)
        return wcat.astype(jnp.bfloat16), shift.astype(jnp.float32)

    pe = params["pe"][:max_length]                            # (T, E)
    q = jnp.dot(pe, params["proj_w"].T,
                precision=jax.lax.Precision.HIGHEST) + params["proj_b"][None, :]
    return {"enc": [fold(p) for p in params["enc"]],
            "dec": [fold(p) for p in params["dec"]],
            "q": q.astype(jnp.float32)}


# ----------------------------------------------------------------------------
# Synthetic parameters (deterministic)
# ----------------------------------------------------------------------------

def make_positional_encoding(max_len, d):
    position = jnp.arange(max_len, dtype=jnp.float32)[:, None]
    div_term = jnp.exp(jnp.arange(0, d, 2, dtype=jnp.float32) * (-math.log(10000.0) / d))
    pe = jnp.zeros((max_len, d), dtype=jnp.float32)
    pe = pe.at[:, 0::2].set(jnp.sin(position * div_term))
    pe = pe.at[:, 1::2].set(jnp.cos(position * div_term))
    return pe


def make_conv_bn_params(key, cin, cout, k=3):
    ks = jax.random.split(key, 6)
    w = jax.random.normal(ks[0], (cout, cin, k), jnp.float32) * (1.0 / math.sqrt(cin * k))
    b = jax.random.normal(ks[1], (cout,), jnp.float32) * 0.01
    gamma = jax.random.uniform(ks[2], (cout,), jnp.float32, 0.5, 1.5)
    beta = jax.random.normal(ks[3], (cout,), jnp.float32) * 0.1
    mean = jax.random.normal(ks[4], (cout,), jnp.float32) * 0.1
    var = jax.random.uniform(ks[5], (cout,), jnp.float32, 0.5, 1.5)
    return (w, b, gamma, beta, mean, var)


def make_params(key, in_channels, num_channels, max_length):
    keys = jax.random.split(key, 10)
    enc = [
        make_conv_bn_params(keys[0], in_channels, num_channels),
        make_conv_bn_params(keys[1], num_channels, num_channels),
        make_conv_bn_params(keys[2], num_channels, num_channels),
        make_conv_bn_params(keys[3], num_channels, num_channels),
    ]
    dec = [
        make_conv_bn_params(keys[4], num_channels, num_channels),
        make_conv_bn_params(keys[5], num_channels, num_channels),
        make_conv_bn_params(keys[6], num_channels, num_channels),
        make_conv_bn_params(keys[7], num_channels, in_channels),
    ]
    proj_w = jax.random.normal(keys[8], (in_channels, in_channels), jnp.float32) * (
        1.0 / math.sqrt(in_channels))
    proj_b = jax.random.normal(keys[9], (in_channels,), jnp.float32) * 0.01
    pe = make_positional_encoding(max_length, in_channels)
    return {"enc": enc, "dec": dec, "proj_w": proj_w, "proj_b": proj_b, "pe": pe}


# ----------------------------------------------------------------------------
# Pure-JAX reference (same folded bf16 weights; independent conv/upsample/softmax impl)
# ----------------------------------------------------------------------------

def reference_forward(x, prep, *, l_size):
    N, E, L = x.shape
    x_cl = jnp.transpose(x, (0, 2, 1)).astype(jnp.float32)

    def conv_bn_relu(h, wcat, shift, stride):
        n, lin, cin = h.shape
        cout = wcat.shape[1]
        hp = jnp.pad(h, ((0, 0), (1, 1), (0, 0))).astype(jnp.bfloat16)
        w3 = wcat.reshape(3, cin, cout)
        lout = (lin - 1) // stride + 1
        y = jnp.zeros((n, lout, cout), jnp.float32)
        for t in range(3):
            ht = hp[:, t: t + (lout - 1) * stride + 1: stride, :]
            y = y + jnp.einsum("nlc,cd->nld", ht, w3[t],
                               preferred_element_type=jnp.float32)
        return jnp.maximum(y + shift[None], 0.0)

    k = x_cl
    feats = []
    for (w, s) in prep["enc"]:
        k = conv_bn_relu(k, w, s, stride=2)
        feats.append(k)
    n_dec = len(prep["dec"])
    for i in range(n_dec - 1):
        w, s = prep["dec"][i]
        k = conv_bn_relu(jnp.repeat(k, 2, axis=1), w, s, stride=1) + feats[n_dec - 2 - i]
    w, s = prep["dec"][-1]
    lin = k.shape[1]
    src = (jnp.arange(l_size) * lin) // l_size
    k = conv_bn_relu(k[:, src, :], w, s, stride=1)

    q = prep["q"]
    scores = jnp.einsum("te,nle->ntl", q, k,
                        precision=jax.lax.Precision.HIGHEST) / math.sqrt(E)
    p = jax.nn.softmax(scores, axis=-1)
    vecs = jnp.einsum("ntl,nle->nte", p, x_cl, precision=jax.lax.Precision.HIGHEST)
    return vecs, p


# ----------------------------------------------------------------------------
# main
# ----------------------------------------------------------------------------

if __name__ == "__main__":
    # small shapes: N=2, in_channels E=32, num_channels=8, L=l=16, max_length T=8
    N, E, L = 2, 32, 16
    NUM_CHANNELS = 8
    MAX_LENGTH = 8
    L_SIZE = 16                      # decoder output length; equals L so scores @ v is valid

    key = jax.random.PRNGKey(0)
    kx, kp = jax.random.split(key)
    x = jax.random.normal(kx, (N, E, L), jnp.float32)
    params = make_params(kp, E, NUM_CHANNELS, MAX_LENGTH)
    prep = prepare_params(params, max_length=MAX_LENGTH)   # hoisted out of the jitted forward

    fwd = jax.jit(functools.partial(position_attention_forward, l_size=L_SIZE))
    attn_vecs, attn_scores = fwd(x, prep)
    attn_vecs = jax.block_until_ready(attn_vecs)
    attn_scores = jax.block_until_ready(attn_scores)

    assert attn_vecs.shape == (N, MAX_LENGTH, E)
    assert attn_scores.shape == (N, MAX_LENGTH, L_SIZE)
    # exact softmax normalisation -> tight row-sum check
    assert bool(jnp.allclose(jnp.sum(attn_scores, axis=-1), 1.0, atol=1e-3))
    assert bool(jnp.all(jnp.isfinite(attn_vecs)))
    assert bool(jnp.all(jnp.isfinite(attn_scores)))

    # validate against the pure-JAX reference (bf16 conv weights in both -> loose tolerance)
    ref_vecs, ref_scores = reference_forward(x, prep, l_size=L_SIZE)
    assert bool(jnp.allclose(attn_scores, ref_scores, atol=2e-2, rtol=2e-2))
    assert bool(jnp.allclose(attn_vecs, ref_vecs, atol=2e-2, rtol=2e-2))

    print("KERNEL_OK")
</pallas_src>

<mosaic_0001>
module attributes {stable_mosaic.version = 11 : i64} {
  func.func @_fused_kernel(%arg0: i32, %arg1: memref<1x16x32xf32, #tpu.memory_space<vmem>>, %arg2: memref<8x32xf32, #tpu.memory_space<vmem>>, %arg3: memref<96x8xbf16, #tpu.memory_space<vmem>>, %arg4: memref<1x8xf32, #tpu.memory_space<vmem>>, %arg5: memref<24x8xbf16, #tpu.memory_space<vmem>>, %arg6: memref<1x8xf32, #tpu.memory_space<vmem>>, %arg7: memref<24x8xbf16, #tpu.memory_space<vmem>>, %arg8: memref<1x8xf32, #tpu.memory_space<vmem>>, %arg9: memref<24x8xbf16, #tpu.memory_space<vmem>>, %arg10: memref<1x8xf32, #tpu.memory_space<vmem>>, %arg11: memref<24x8xbf16, #tpu.memory_space<vmem>>, %arg12: memref<1x8xf32, #tpu.memory_space<vmem>>, %arg13: memref<24x8xbf16, #tpu.memory_space<vmem>>, %arg14: memref<1x8xf32, #tpu.memory_space<vmem>>, %arg15: memref<24x8xbf16, #tpu.memory_space<vmem>>, %arg16: memref<1x8xf32, #tpu.memory_space<vmem>>, %arg17: memref<24x32xbf16, #tpu.memory_space<vmem>>, %arg18: memref<1x32xf32, #tpu.memory_space<vmem>>, %arg19: memref<1x8x32xf32, #tpu.memory_space<vmem>>, %arg20: memref<1x8x16xf32, #tpu.memory_space<vmem>>) attributes {dimension_semantics = [#tpu.dimension_semantics<parallel>], iteration_bounds = array<i64: 2>, scalar_prefetch = 0 : i64, scratch_operands = 0 : i64, tpu.core_type = #tpu.core_type<tc>, window_params = [{transform_indices = @transform_0, window_bounds = array<i64: 1, 16, 32>}, {pipeline_mode = #tpu.pipeline_mode<synchronous>, transform_indices = @transform_1, window_bounds = array<i64: 8, 32>}, {pipeline_mode = #tpu.pipeline_mode<synchronous>, transform_indices = @transform_2, window_bounds = array<i64: 96, 8>}, {pipeline_mode = #tpu.pipeline_mode<synchronous>, transform_indices = @transform_3, window_bounds = array<i64: 1, 8>}, {pipeline_mode = #tpu.pipeline_mode<synchronous>, transform_indices = @transform_4, window_bounds = array<i64: 24, 8>}, {pipeline_mode = #tpu.pipeline_mode<synchronous>, transform_indices = @transform_5, window_bounds = array<i64: 1, 8>}, {pipeline_mode = #tpu.pipeline_mode<synchronous>, transform_indices = @transform_6, window_bounds = array<i64: 24, 8>}, {pipeline_mode = #tpu.pipeline_mode<synchronous>, transform_indices = @transform_7, window_bounds = array<i64: 1, 8>}, {pipeline_mode = #tpu.pipeline_mode<synchronous>, transform_indices = @transform_8, window_bounds = array<i64: 24, 8>}, {pipeline_mode = #tpu.pipeline_mode<synchronous>, transform_indices = @transform_9, window_bounds = array<i64: 1, 8>}, {pipeline_mode = #tpu.pipeline_mode<synchronous>, transform_indices = @transform_10, window_bounds = array<i64: 24, 8>}, {pipeline_mode = #tpu.pipeline_mode<synchronous>, transform_indices = @transform_11, window_bounds = array<i64: 1, 8>}, {pipeline_mode = #tpu.pipeline_mode<synchronous>, transform_indices = @transform_12, window_bounds = array<i64: 24, 8>}, {pipeline_mode = #tpu.pipeline_mode<synchronous>, transform_indices = @transform_13, window_bounds = array<i64: 1, 8>}, {pipeline_mode = #tpu.pipeline_mode<synchronous>, transform_indices = @transform_14, window_bounds = array<i64: 24, 8>}, {pipeline_mode = #tpu.pipeline_mode<synchronous>, transform_indices = @transform_15, window_bounds = array<i64: 1, 8>}, {pipeline_mode = #tpu.pipeline_mode<synchronous>, transform_indices = @transform_16, window_bounds = array<i64: 24, 32>}, {pipeline_mode = #tpu.pipeline_mode<synchronous>, transform_indices = @transform_17, window_bounds = array<i64: 1, 32>}, {transform_indices = @transform_18, window_bounds = array<i64: 1, 8, 32>}, {transform_indices = @transform_19, window_bounds = array<i64: 1, 8, 16>}]} {
    %c0 = arith.constant 0 : index
    %c0_0 = arith.constant 0 : index
    %c0_1 = arith.constant 0 : index
    %0 = vector.load %arg1[%c0, %c0_0, %c0_1] : memref<1x16x32xf32, #tpu.memory_space<vmem>>, vector<1x16x32xf32>
    %1 = vector.shape_cast %0 : vector<1x16x32xf32> to vector<16x32xf32>
    %2 = tpu.iota {dimensions = array<i32: 0>} : vector<8x16xi32>
    %3 = tpu.iota {dimensions = array<i32: 1>} : vector<8x16xi32>
    %c2_i32 = arith.constant 2 : i32
    %4 = vector.broadcast %c2_i32 : i32 to vector<8x16xi32>
    %5 = arith.muli %4, %2 : vector<8x16xi32>
    %6 = arith.cmpi eq, %3, %5 : vector<8x16xi32>
    %7 = arith.extui %6 : vector<8x16xi1> to vector<8x16xi32>
    %8 = arith.sitofp %7 : vector<8x16xi32> to vector<8x16xf32>
    %cst = arith.constant 0.000000e+00 : f32
    %9 = vector.broadcast %cst : f32 to vector<1x32xf32>
    %10 = tpu.concatenate %9, %1, %9 in 0 : vector<1x32xf32>, vector<16x32xf32>, vector<1x32xf32> -> vector<18x32xf32>
    %11 = vector.extract_strided_slice %10 {offsets = [0, 0], sizes = [16, 32], strides = [1, 1]} : vector<18x32xf32> to vector<16x32xf32>
    %12 = vector.extract_strided_slice %10 {offsets = [1, 0], sizes = [16, 32], strides = [1, 1]} : vector<18x32xf32> to vector<16x32xf32>
    %13 = vector.extract_strided_slice %10 {offsets = [2, 0], sizes = [16, 32], strides = [1, 1]} : vector<18x32xf32> to vector<16x32xf32>
    %14 = tpu.concatenate %11, %12, %13 in 1 : vector<16x32xf32>, vector<16x32xf32>, vector<16x32xf32> -> vector<16x96xf32>
    %cst_2 = arith.constant dense<0.000000e+00> : vector<8x96xf32>
    %15 = tpu.matmul %8, %14, %cst_2 {dimension_numbers = #tpu.dot_dimension_numbers<[1], [0], [0], [1], [0, 0, 1, 1], [], []>} : vector<8x16xf32>, vector<16x96xf32>, vector<8x96xf32> -> vector<8x96xf32>
    %16 = arith.truncf %15 : vector<8x96xf32> to vector<8x96xbf16>
    %c0_3 = arith.constant 0 : index
    %c0_4 = arith.constant 0 : index
    %17 = vector.load %arg3[%c0_3, %c0_4] : memref<96x8xbf16, #tpu.memory_space<vmem>>, vector<96x8xbf16>
    %cst_5 = arith.constant dense<0.000000e+00> : vector<8x8xf32>
    %18 = tpu.matmul %16, %17, %cst_5 {dimension_numbers = #tpu.dot_dimension_numbers<[1], [0], [0], [1], [0, 0, 1, 1], [], []>} : vector<8x96xbf16>, vector<96x8xbf16>, vector<8x8xf32> -> vector<8x8xf32>
    %c0_6 = arith.constant 0 : index
    %c0_7 = arith.constant 0 : index
    %19 = vector.load %arg4[%c0_6, %c0_7] : memref<1x8xf32, #tpu.memory_space<vmem>>, vector<1x8xf32>
    %20 = vector.broadcast %19 : vector<1x8xf32> to vector<8x8xf32>
    %21 = arith.addf %18, %20 : vector<8x8xf32>
    %cst_8 = arith.constant 0.000000e+00 : f32
    %22 = vector.broadcast %cst_8 : f32 to vector<8x8xf32>
    %23 = arith.maximumf %21, %22 : vector<8x8xf32>
    %24 = tpu.iota {dimensions = array<i32: 0>} : vector<4x8xi32>
    %25 = tpu.iota {dimensions = array<i32: 1>} : vector<4x8xi32>
    %c2_i32_9 = arith.constant 2 : i32
    %26 = vector.broadcast %c2_i32_9 : i32 to vector<4x8xi32>
    %27 = arith.muli %26, %24 : vector<4x8xi32>
    %28 = arith.cmpi eq, %25, %27 : vector<4x8xi32>
    %29 = arith.extui %28 : vector<4x8xi1> to vector<4x8xi32>
    %30 = arith.sitofp %29 : vector<4x8xi32> to vector<4x8xf32>
    %cst_10 = arith.constant 0.000000e+00 : f32
    %31 = vector.broadcast %cst_10 : f32 to vector<1x8xf32>
    %32 = tpu.concatenate %31, %23, %31 in 0 : vector<1x8xf32>, vector<8x8xf32>, vector<1x8xf32> -> vector<10x8xf32>
    %33 = vector.extract_strided_slice %32 {offsets = [0, 0], sizes = [8, 8], strides = [1, 1]} : vector<10x8xf32> to vector<8x8xf32>
    %34 = vector.extract_strided_slice %32 {offsets = [1, 0], sizes = [8, 8], strides = [1, 1]} : vector<10x8xf32> to vector<8x8xf32>
    %35 = vector.extract_strided_slice %32 {offsets = [2, 0], sizes = [8, 8], strides = [1, 1]} : vector<10x8xf32> to vector<8x8xf32>
    %36 = tpu.concatenate %33, %34, %35 in 1 : vector<8x8xf32>, vector<8x8xf32>, vector<8x8xf32> -> vector<8x24xf32>
    %cst_11 = arith.constant dense<0.000000e+00> : vector<4x24xf32>
    %37 = tpu.matmul %30, %36, %cst_11 {dimension_numbers = #tpu.dot_dimension_numbers<[1], [0], [0], [1], [0, 0, 1, 1], [], []>} : vector<4x8xf32>, vector<8x24xf32>, vector<4x24xf32> -> vector<4x24xf32>
    %38 = arith.truncf %37 : vector<4x24xf32> to vector<4x24xbf16>
    %c0_12 = arith.constant 0 : index
    %c0_13 = arith.constant 0 : index
    %39 = vector.load %arg5[%c0_12, %c0_13] : memref<24x8xbf16, #tpu.memory_space<vmem>>, vector<24x8xbf16>
    %cst_14 = arith.constant dense<0.000000e+00> : vector<4x8xf32>
    %40 = tpu.matmul %38, %39, %cst_14 {dimension_numbers = #tpu.dot_dimension_numbers<[1], [0], [0], [1], [0, 0, 1, 1], [], []>} : vector<4x24xbf16>, vector<24x8xbf16>, vector<4x8xf32> -> vector<4x8xf32>
    %c0_15 = arith.constant 0 : index
    %c0_16 = arith.constant 0 : index
    %41 = vector.load %arg6[%c0_15, %c0_16] : memref<1x8xf32, #tpu.memory_space<vmem>>, vector<1x8xf32>
    %42 = vector.broadcast %41 : vector<1x8xf32> to vector<4x8xf32>
    %43 = arith.addf %40, %42 : vector<4x8xf32>
    %cst_17 = arith.constant 0.000000e+00 : f32
    %44 = vector.broadcast %cst_17 : f32 to vector<4x8xf32>
    %45 = arith.maximumf %43, %44 : vector<4x8xf32>
    %46 = tpu.iota {dimensions = array<i32: 0>} : vector<2x4xi32>
    %47 = tpu.iota {dimensions = array<i32: 1>} : vector<2x4xi32>
    %c2_i32_18 = arith.constant 2 : i32
    %48 = vector.broadcast %c2_i32_18 : i32 to vector<2x4xi32>
    %49 = arith.muli %48, %46 : vector<2x4xi32>
    %50 = arith.cmpi eq, %47, %49 : vector<2x4xi32>
    %51 = arith.extui %50 : vector<2x4xi1> to vector<2x4xi32>
    %52 = arith.sitofp %51 : vector<2x4xi32> to vector<2x4xf32>
    %cst_19 = arith.constant 0.000000e+00 : f32
    %53 = vector.broadcast %cst_19 : f32 to vector<1x8xf32>
    %54 = tpu.concatenate %53, %45, %53 in 0 : vector<1x8xf32>, vector<4x8xf32>, vector<1x8xf32> -> vector<6x8xf32>
    %55 = vector.extract_strided_slice %54 {offsets = [0, 0], sizes = [4, 8], strides = [1, 1]} : vector<6x8xf32> to vector<4x8xf32>
    %56 = vector.extract_strided_slice %54 {offsets = [1, 0], sizes = [4, 8], strides = [1, 1]} : vector<6x8xf32> to vector<4x8xf32>
    %57 = vector.extract_strided_slice %54 {offsets = [2, 0], sizes = [4, 8], strides = [1, 1]} : vector<6x8xf32> to vector<4x8xf32>
    %58 = tpu.concatenate %55, %56, %57 in 1 : vector<4x8xf32>, vector<4x8xf32>, vector<4x8xf32> -> vector<4x24xf32>
    %cst_20 = arith.constant dense<0.000000e+00> : vector<2x24xf32>
    %59 = tpu.matmul %52, %58, %cst_20 {dimension_numbers = #tpu.dot_dimension_numbers<[1], [0], [0], [1], [0, 0, 1, 1], [], []>} : vector<2x4xf32>, vector<4x24xf32>, vector<2x24xf32> -> vector<2x24xf32>
    %60 = arith.truncf %59 : vector<2x24xf32> to vector<2x24xbf16>
    %c0_21 = arith.constant 0 : index
    %c0_22 = arith.constant 0 : index
    %61 = vector.load %arg7[%c0_21, %c0_22] : memref<24x8xbf16, #tpu.memory_space<vmem>>, vector<24x8xbf16>
    %cst_23 = arith.constant dense<0.000000e+00> : vector<2x8xf32>
    %62 = tpu.matmul %60, %61, %cst_23 {dimension_numbers = #tpu.dot_dimension_numbers<[1], [0], [0], [1], [0, 0, 1, 1], [], []>} : vector<2x24xbf16>, vector<24x8xbf16>, vector<2x8xf32> -> vector<2x8xf32>
    %c0_24 = arith.constant 0 : index
    %c0_25 = arith.constant 0 : index
    %63 = vector.load %arg8[%c0_24, %c0_25] : memref<1x8xf32, #tpu.memory_space<vmem>>, vector<1x8xf32>
    %64 = vector.broadcast %63 : vector<1x8xf32> to vector<2x8xf32>
    %65 = arith.addf %62, %64 : vector<2x8xf32>
    %cst_26 = arith.constant 0.000000e+00 : f32
    %66 = vector.broadcast %cst_26 : f32 to vector<2x8xf32>
    %67 = arith.maximumf %65, %66 : vector<2x8xf32>
    %68 = tpu.iota {dimensions = array<i32: 0>} : vector<1x2xi32>
    %69 = tpu.iota {dimensions = array<i32: 1>} : vector<1x2xi32>
    %c2_i32_27 = arith.constant 2 : i32
    %70 = vector.broadcast %c2_i32_27 : i32 to vector<1x2xi32>
    %71 = arith.muli %70, %68 : vector<1x2xi32>
    %72 = arith.cmpi eq, %69, %71 : vector<1x2xi32>
    %73 = arith.extui %72 : vector<1x2xi1> to vector<1x2xi32>
    %74 = arith.sitofp %73 : vector<1x2xi32> to vector<1x2xf32>
    %cst_28 = arith.constant 0.000000e+00 : f32
    %75 = vector.broadcast %cst_28 : f32 to vector<1x8xf32>
    %76 = tpu.concatenate %75, %67, %75 in 0 : vector<1x8xf32>, vector<2x8xf32>, vector<1x8xf32> -> vector<4x8xf32>
    %77 = vector.extract_strided_slice %76 {offsets = [0, 0], sizes = [2, 8], strides = [1, 1]} : vector<4x8xf32> to vector<2x8xf32>
    %78 = vector.extract_strided_slice %76 {offsets = [1, 0], sizes = [2, 8], strides = [1, 1]} : vector<4x8xf32> to vector<2x8xf32>
    %79 = vector.extract_strided_slice %76 {offsets = [2, 0], sizes = [2, 8], strides = [1, 1]} : vector<4x8xf32> to vector<2x8xf32>
    %80 = tpu.concatenate %77, %78, %79 in 1 : vector<2x8xf32>, vector<2x8xf32>, vector<2x8xf32> -> vector<2x24xf32>
    %cst_29 = arith.constant dense<0.000000e+00> : vector<1x24xf32>
    %81 = tpu.matmul %74, %80, %cst_29 {dimension_numbers = #tpu.dot_dimension_numbers<[1], [0], [0], [1], [0, 0, 1, 1], [], []>} : vector<1x2xf32>, vector<2x24xf32>, vector<1x24xf32> -> vector<1x24xf32>
    %82 = arith.truncf %81 : vector<1x24xf32> to vector<1x24xbf16>
    %c0_30 = arith.constant 0 : index
    %c0_31 = arith.constant 0 : index
    %83 = vector.load %arg9[%c0_30, %c0_31] : memref<24x8xbf16, #tpu.memory_space<vmem>>, vector<24x8xbf16>
    %cst_32 = arith.constant dense<0.000000e+00> : vector<1x8xf32>
    %84 = tpu.matmul %82, %83, %cst_32 {dimension_numbers = #tpu.dot_dimension_numbers<[1], [0], [0], [1], [0, 0, 1, 1], [], []>} : vector<1x24xbf16>, vector<24x8xbf16>, vector<1x8xf32> -> vector<1x8xf32>
    %c0_33 = arith.constant 0 : index
    %c0_34 = arith.constant 0 : index
    %85 = vector.load %arg10[%c0_33, %c0_34] : memref<1x8xf32, #tpu.memory_space<vmem>>, vector<1x8xf32>
    %86 = arith.addf %84, %85 : vector<1x8xf32>
    %cst_35 = arith.constant 0.000000e+00 : f32
    %87 = vector.broadcast %cst_35 : f32 to vector<1x8xf32>
    %88 = arith.maximumf %86, %87 : vector<1x8xf32>
    %89 = tpu.concatenate %88, %88 in 0 : vector<1x8xf32>, vector<1x8xf32> -> vector<2x8xf32>
    %cst_36 = arith.constant 0.000000e+00 : f32
    %90 = vector.broadcast %cst_36 : f32 to vector<1x8xf32>
    %91 = tpu.concatenate %90, %89, %90 in 0 : vector<1x8xf32>, vector<2x8xf32>, vector<1x8xf32> -> vector<4x8xf32>
    %92 = vector.extract_strided_slice %91 {offsets = [0, 0], sizes = [2, 8], strides = [1, 1]} : vector<4x8xf32> to vector<2x8xf32>
    %93 = vector.extract_strided_slice %91 {offsets = [1, 0], sizes = [2, 8], strides = [1, 1]} : vector<4x8xf32> to vector<2x8xf32>
    %94 = vector.extract_strided_slice %91 {offsets = [2, 0], sizes = [2, 8], strides = [1, 1]} : vector<4x8xf32> to vector<2x8xf32>
    %95 = tpu.concatenate %92, %93, %94 in 1 : vector<2x8xf32>, vector<2x8xf32>, vector<2x8xf32> -> vector<2x24xf32>
    %96 = arith.truncf %95 : vector<2x24xf32> to vector<2x24xbf16>
    %c0_37 = arith.constant 0 : index
    %c0_38 = arith.constant 0 : index
    %97 = vector.load %arg11[%c0_37, %c0_38] : memref<24x8xbf16, #tpu.memory_space<vmem>>, vector<24x8xbf16>
    %cst_39 = arith.constant dense<0.000000e+00> : vector<2x8xf32>
    %98 = tpu.matmul %96, %97, %cst_39 {dimension_numbers = #tpu.dot_dimension_numbers<[1], [0], [0], [1], [0, 0, 1, 1], [], []>} : vector<2x24xbf16>, vector<24x8xbf16>, vector<2x8xf32> -> vector<2x8xf32>
    %c0_40 = arith.constant 0 : index
    %c0_41 = arith.constant 0 : index
    %99 = vector.load %arg12[%c0_40, %c0_41] : memref<1x8xf32, #tpu.memory_space<vmem>>, vector<1x8xf32>
    %100 = vector.broadcast %99 : vector<1x8xf32> to vector<2x8xf32>
    %101 = arith.addf %98, %100 : vector<2x8xf32>
    %cst_42 = arith.constant 0.000000e+00 : f32
    %102 = vector.broadcast %cst_42 : f32 to vector<2x8xf32>
    %103 = arith.maximumf %101, %102 : vector<2x8xf32>
    %104 = arith.addf %103, %67 : vector<2x8xf32>
    %105 = tpu.iota {dimensions = array<i32: 0>} : vector<4x2xi32>
    %106 = tpu.iota {dimensions = array<i32: 1>} : vector<4x2xi32>
    %c2_i32_43 = arith.constant 2 : i32
    %107 = vector.broadcast %c2_i32_43 : i32 to vector<4x2xi32>
    %108 = arith.muli %107, %106 : vector<4x2xi32>
    %109 = arith.cmpi eq, %105, %108 : vector<4x2xi32>
    %c2_i32_44 = arith.constant 2 : i32
    %110 = vector.broadcast %c2_i32_44 : i32 to vector<4x2xi32>
    %111 = arith.muli %110, %106 : vector<4x2xi32>
    %c1_i32 = arith.constant 1 : i32
    %112 = vector.broadcast %c1_i32 : i32 to vector<4x2xi32>
    %113 = arith.addi %111, %112 : vector<4x2xi32>
    %114 = arith.cmpi eq, %105, %113 : vector<4x2xi32>
    %115 = arith.ori %109, %114 : vector<4x2xi1>
    %116 = arith.extui %115 : vector<4x2xi1> to vector<4x2xi32>
    %117 = arith.sitofp %116 : vector<4x2xi32> to vector<4x2xf32>
    %cst_45 = arith.constant dense<0.000000e+00> : vector<4x8xf32>
    %118 = tpu.matmul %117, %104, %cst_45 {dimension_numbers = #tpu.dot_dimension_numbers<[1], [0], [0], [1], [0, 0, 1, 1], [], []>} : vector<4x2xf32>, vector<2x8xf32>, vector<4x8xf32> -> vector<4x8xf32>
    %cst_46 = arith.constant 0.000000e+00 : f32
    %119 = vector.broadcast %cst_46 : f32 to vector<1x8xf32>
    %120 = tpu.concatenate %119, %118, %119 in 0 : vector<1x8xf32>, vector<4x8xf32>, vector<1x8xf32> -> vector<6x8xf32>
    %121 = vector.extract_strided_slice %120 {offsets = [0, 0], sizes = [4, 8], strides = [1, 1]} : vector<6x8xf32> to vector<4x8xf32>
    %122 = vector.extract_strided_slice %120 {offsets = [1, 0], sizes = [4, 8], strides = [1, 1]} : vector<6x8xf32> to vector<4x8xf32>
    %123 = vector.extract_strided_slice %120 {offsets = [2, 0], sizes = [4, 8], strides = [1, 1]} : vector<6x8xf32> to vector<4x8xf32>
    %124 = tpu.concatenate %121, %122, %123 in 1 : vector<4x8xf32>, vector<4x8xf32>, vector<4x8xf32> -> vector<4x24xf32>
    %125 = arith.truncf %124 : vector<4x24xf32> to vector<4x24xbf16>
    %c0_47 = arith.constant 0 : index
    %c0_48 = arith.constant 0 : index
    %126 = vector.load %arg13[%c0_47, %c0_48] : memref<24x8xbf16, #tpu.memory_space<vmem>>, vector<24x8xbf16>
    %cst_49 = arith.constant dense<0.000000e+00> : vector<4x8xf32>
    %127 = tpu.matmul %125, %126, %cst_49 {dimension_numbers = #tpu.dot_dimension_numbers<[1], [0], [0], [1], [0, 0, 1, 1], [], []>} : vector<4x24xbf16>, vector<24x8xbf16>, vector<4x8xf32> -> vector<4x8xf32>
    %c0_50 = arith.constant 0 : index
    %c0_51 = arith.constant 0 : index
    %128 = vector.load %arg14[%c0_50, %c0_51] : memref<1x8xf32, #tpu.memory_space<vmem>>, vector<1x8xf32>
    %129 = vector.broadcast %128 : vector<1x8xf32> to vector<4x8xf32>
    %130 = arith.addf %127, %129 : vector<4x8xf32>
    %cst_52 = arith.constant 0.000000e+00 : f32
    %131 = vector.broadcast %cst_52 : f32 to vector<4x8xf32>
    %132 = arith.maximumf %130, %131 : vector<4x8xf32>
    %133 = arith.addf %132, %45 : vector<4x8xf32>
    %134 = tpu.iota {dimensions = array<i32: 0>} : vector<8x4xi32>
    %135 = tpu.iota {dimensions = array<i32: 1>} : vector<8x4xi32>
    %c2_i32_53 = arith.constant 2 : i32
    %136 = vector.broadcast %c2_i32_53 : i32 to vector<8x4xi32>
    %137 = arith.muli %136, %135 : vector<8x4xi32>
    %138 = arith.cmpi eq, %134, %137 : vector<8x4xi32>
    %c2_i32_54 = arith.constant 2 : i32
    %139 = vector.broadcast %c2_i32_54 : i32 to vector<8x4xi32>
    %140 = arith.muli %139, %135 : vector<8x4xi32>
    %c1_i32_55 = arith.constant 1 : i32
    %141 = vector.broadcast %c1_i32_55 : i32 to vector<8x4xi32>
    %142 = arith.addi %140, %141 : vector<8x4xi32>
    %143 = arith.cmpi eq, %134, %142 : vector<8x4xi32>
    %144 = arith.ori %138, %143 : vector<8x4xi1>
    %145 = arith.extui %144 : vector<8x4xi1> to vector<8x4xi32>
    %146 = arith.sitofp %145 : vector<8x4xi32> to vector<8x4xf32>
    %cst_56 = arith.constant dense<0.000000e+00> : vector<8x8xf32>
    %147 = tpu.matmul %146, %133, %cst_56 {dimension_numbers = #tpu.dot_dimension_numbers<[1], [0], [0], [1], [0, 0, 1, 1], [], []>} : vector<8x4xf32>, vector<4x8xf32>, vector<8x8xf32> -> vector<8x8xf32>
    %cst_57 = arith.constant 0.000000e+00 : f32
    %148 = vector.broadcast %cst_57 : f32 to vector<1x8xf32>
    %149 = tpu.concatenate %148, %147, %148 in 0 : vector<1x8xf32>, vector<8x8xf32>, vector<1x8xf32> -> vector<10x8xf32>
    %150 = vector.extract_strided_slice %149 {offsets = [0, 0], sizes = [8, 8], strides = [1, 1]} : vector<10x8xf32> to vector<8x8xf32>
    %151 = vector.extract_strided_slice %149 {offsets = [1, 0], sizes = [8, 8], strides = [1, 1]} : vector<10x8xf32> to vector<8x8xf32>
    %152 = vector.extract_strided_slice %149 {offsets = [2, 0], sizes = [8, 8], strides = [1, 1]} : vector<10x8xf32> to vector<8x8xf32>
    %153 = tpu.concatenate %150, %151, %152 in 1 : vector<8x8xf32>, vector<8x8xf32>, vector<8x8xf32> -> vector<8x24xf32>
    %154 = arith.truncf %153 : vector<8x24xf32> to vector<8x24xbf16>
    %c0_58 = arith.constant 0 : index
    %c0_59 = arith.constant 0 : index
    %155 = vector.load %arg15[%c0_58, %c0_59] : memref<24x8xbf16, #tpu.memory_space<vmem>>, vector<24x8xbf16>
    %cst_60 = arith.constant dense<0.000000e+00> : vector<8x8xf32>
    %156 = tpu.matmul %154, %155, %cst_60 {dimension_numbers = #tpu.dot_dimension_numbers<[1], [0], [0], [1], [0, 0, 1, 1], [], []>} : vector<8x24xbf16>, vector<24x8xbf16>, vector<8x8xf32> -> vector<8x8xf32>
    %c0_61 = arith.constant 0 : index
    %c0_62 = arith.constant 0 : index
    %157 = vector.load %arg16[%c0_61, %c0_62] : memref<1x8xf32, #tpu.memory_space<vmem>>, vector<1x8xf32>
    %158 = vector.broadcast %157 : vector<1x8xf32> to vector<8x8xf32>
    %159 = arith.addf %156, %158 : vector<8x8xf32>
    %cst_63 = arith.constant 0.000000e+00 : f32
    %160 = vector.broadcast %cst_63 : f32 to vector<8x8xf32>
    %161 = arith.maximumf %159, %160 : vector<8x8xf32>
    %162 = arith.addf %161, %23 : vector<8x8xf32>
    %163 = tpu.iota {dimensions = array<i32: 0>} : vector<16x8xi32>
    %164 = tpu.iota {dimensions = array<i32: 1>} : vector<16x8xi32>
    %c8_i32 = arith.constant 8 : i32
    %165 = vector.broadcast %c8_i32 : i32 to vector<16x8xi32>
    %166 = arith.muli %163, %165 : vector<16x8xi32>
    %c16_i32 = arith.constant 16 : i32
    %167 = vector.broadcast %c16_i32 : i32 to vector<16x8xi32>
    %168 = arith.muli %164, %167 : vector<16x8xi32>
    %169 = arith.cmpi sle, %168, %166 : vector<16x8xi32>
    %c1_i32_64 = arith.constant 1 : i32
    %170 = vector.broadcast %c1_i32_64 : i32 to vector<16x8xi32>
    %171 = arith.addi %164, %170 : vector<16x8xi32>
    %c16_i32_65 = arith.constant 16 : i32
    %172 = vector.broadcast %c16_i32_65 : i32 to vector<16x8xi32>
    %173 = arith.muli %171, %172 : vector<16x8xi32>
    %174 = arith.cmpi slt, %166, %173 : vector<16x8xi32>
    %175 = arith.andi %169, %174 : vector<16x8xi1>
    %176 = arith.extui %175 : vector<16x8xi1> to vector<16x8xi32>
    %177 = arith.sitofp %176 : vector<16x8xi32> to vector<16x8xf32>
    %cst_66 = arith.constant dense<0.000000e+00> : vector<16x8xf32>
    %178 = tpu.matmul %177, %162, %cst_66 {dimension_numbers = #tpu.dot_dimension_numbers<[1], [0], [0], [1], [0, 0, 1, 1], [], []>} : vector<16x8xf32>, vector<8x8xf32>, vector<16x8xf32> -> vector<16x8xf32>
    %cst_67 = arith.constant 0.000000e+00 : f32
    %179 = vector.broadcast %cst_67 : f32 to vector<1x8xf32>
    %180 = tpu.concatenate %179, %178, %179 in 0 : vector<1x8xf32>, vector<16x8xf32>, vector<1x8xf32> -> vector<18x8xf32>
    %181 = vector.extract_strided_slice %180 {offsets = [0, 0], sizes = [16, 8], strides = [1, 1]} : vector<18x8xf32> to vector<16x8xf32>
    %182 = vector.extract_strided_slice %180 {offsets = [1, 0], sizes = [16, 8], strides = [1, 1]} : vector<18x8xf32> to vector<16x8xf32>
    %183 = vector.extract_strided_slice %180 {offsets = [2, 0], sizes = [16, 8], strides = [1, 1]} : vector<18x8xf32> to vector<16x8xf32>
    %184 = tpu.concatenate %181, %182, %183 in 1 : vector<16x8xf32>, vector<16x8xf32>, vector<16x8xf32> -> vector<16x24xf32>
    %185 = arith.truncf %184 : vector<16x24xf32> to vector<16x24xbf16>
    %c0_68 = arith.constant 0 : index
    %c0_69 = arith.constant 0 : index
    %186 = vector.load %arg17[%c0_68, %c0_69] : memref<24x32xbf16, #tpu.memory_space<vmem>>, vector<24x32xbf16>
    %cst_70 = arith.constant dense<0.000000e+00> : vector<16x32xf32>
    %187 = tpu.matmul %185, %186, %cst_70 {dimension_numbers = #tpu.dot_dimension_numbers<[1], [0], [0], [1], [0, 0, 1, 1], [], []>} : vector<16x24xbf16>, vector<24x32xbf16>, vector<16x32xf32> -> vector<16x32xf32>
    %c0_71 = arith.constant 0 : index
    %c0_72 = arith.constant 0 : index
    %188 = vector.load %arg18[%c0_71, %c0_72] : memref<1x32xf32, #tpu.memory_space<vmem>>, vector<1x32xf32>
    %189 = vector.broadcast %188 : vector<1x32xf32> to vector<16x32xf32>
    %190 = arith.addf %187, %189 : vector<16x32xf32>
    %cst_73 = arith.constant 0.000000e+00 : f32
    %191 = vector.broadcast %cst_73 : f32 to vector<16x32xf32>
    %192 = arith.maximumf %190, %191 : vector<16x32xf32>
    %c0_74 = arith.constant 0 : index
    %c0_75 = arith.constant 0 : index
    %193 = vector.load %arg2[%c0_74, %c0_75] : memref<8x32xf32, #tpu.memory_space<vmem>>, vector<8x32xf32>
    %cst_76 = arith.constant dense<0.000000e+00> : vector<8x16xf32>
    %194 = tpu.matmul %193, %192, %cst_76 {dimension_numbers = #tpu.dot_dimension_numbers<[1], [1], [0], [0], [0, 0, 1, 0], [], []>} : vector<8x32xf32>, vector<16x32xf32>, vector<8x16xf32> -> vector<8x16xf32>
    %cst_77 = arith.constant 0.176776692 : f32
    %195 = vector.broadcast %cst_77 : f32 to vector<8x16xf32>
    %196 = arith.mulf %194, %195 : vector<8x16xf32>
    %cst_78 = arith.constant dense<0xFF800000> : vector<8xf32>
    %197 = vector.multi_reduction <maximumf>, %196, %cst_78 [1] : vector<8x16xf32> to vector<8xf32>
    %198 = vector.shape_cast %197 : vector<8xf32> to vector<8x1xf32>
    %199 = vector.broadcast %198 : vector<8x1xf32> to vector<8x16xf32>
    %200 = arith.subf %196, %199 : vector<8x16xf32>
    %201 = math.exp %200 : vector<8x16xf32>
    %cst_79 = arith.constant dense<0.000000e+00> : vector<8xf32>
    %202 = vector.multi_reduction <add>, %201, %cst_79 [1] : vector<8x16xf32> to vector<8xf32>
    %203 = vector.shape_cast %202 : vector<8xf32> to vector<8x1xf32>
    %204 = vector.broadcast %203 : vector<8x1xf32> to vector<8x16xf32>
    %205 = arith.divf %201, %204 : vector<8x16xf32>
    %c0_80 = arith.constant 0 : index
    %c0_81 = arith.constant 0 : index
    %c0_82 = arith.constant 0 : index
    %206 = vector.load %arg20[%c0_80, %c0_81, %c0_82] : memref<1x8x16xf32, #tpu.memory_space<vmem>>, vector<1x8x16xf32>
    %207 = vector.shape_cast %206 : vector<1x8x16xf32> to vector<8x16xf32>
    %208 = vector.shape_cast %205 : vector<8x16xf32> to vector<1x8x16xf32>
    tpu.vector_store %arg20[%c0_80, %c0_81, %c0_82], %208 {strides = array<i32>} : memref<1x8x16xf32, #tpu.memory_space<vmem>>, vector<1x8x16xf32>,
    %cst_83 = arith.constant dense<0.000000e+00> : vector<8x32xf32>
    %209 = tpu.matmul %205, %1, %cst_83 {dimension_numbers = #tpu.dot_dimension_numbers<[1], [0], [0], [1], [0, 0, 1, 1], [], []>} : vector<8x16xf32>, vector<16x32xf32>, vector<8x32xf32> -> vector<8x32xf32>
    %c0_84 = arith.constant 0 : index
    %c0_85 = arith.constant 0 : index
    %c0_86 = arith.constant 0 : index
    %210 = vector.load %arg19[%c0_84, %c0_85, %c0_86] : memref<1x8x32xf32, #tpu.memory_space<vmem>>, vector<1x8x32xf32>
    %211 = vector.shape_cast %210 : vector<1x8x32xf32> to vector<8x32xf32>
    %212 = vector.shape_cast %209 : vector<8x32xf32> to vector<1x8x32xf32>
    tpu.vector_store %arg19[%c0_84, %c0_85, %c0_86], %212 {strides = array<i32>} : memref<1x8x32xf32, #tpu.memory_space<vmem>>, vector<1x8x32xf32>,
    return
  }
  func.func @transform_0(%arg0: i32) -> (i32, i32, i32) {
    %c0_i32 = arith.constant 0 : i32
    %c0_i32_0 = arith.constant 0 : i32
    %c0_i32_1 = arith.constant 0 : i32
    return %arg0, %c0_i32, %c0_i32_0 : i32, i32, i32
  }
  func.func @transform_1(%arg0: i32) -> (i32, i32) {
    %c0_i32 = arith.constant 0 : i32
    %c0_i32_0 = arith.constant 0 : i32
    %c0_i32_1 = arith.constant 0 : i32
    return %c0_i32, %c0_i32_0 : i32, i32
  }
  func.func @transform_2(%arg0: i32) -> (i32, i32) {
    %c0_i32 = arith.constant 0 : i32
    %c0_i32_0 = arith.constant 0 : i32
    %c0_i32_1 = arith.constant 0 : i32
    return %c0_i32, %c0_i32_0 : i32, i32
  }
  func.func @transform_3(%arg0: i32) -> (i32, i32) {
    %c0_i32 = arith.constant 0 : i32
    %c0_i32_0 = arith.constant 0 : i32
    %c0_i32_1 = arith.constant 0 : i32
    return %c0_i32, %c0_i32_0 : i32, i32
  }
  func.func @transform_4(%arg0: i32) -> (i32, i32) {
    %c0_i32 = arith.constant 0 : i32
    %c0_i32_0 = arith.constant 0 : i32
    %c0_i32_1 = arith.constant 0 : i32
    return %c0_i32, %c0_i32_0 : i32, i32
  }
  func.func @transform_5(%arg0: i32) -> (i32, i32) {
    %c0_i32 = arith.constant 0 : i32
    %c0_i32_0 = arith.constant 0 : i32
    %c0_i32_1 = arith.constant 0 : i32
    return %c0_i32, %c0_i32_0 : i32, i32
  }
  func.func @transform_6(%arg0: i32) -> (i32, i32) {
    %c0_i32 = arith.constant 0 : i32
    %c0_i32_0 = arith.constant 0 : i32
    %c0_i32_1 = arith.constant 0 : i32
    return %c0_i32, %c0_i32_0 : i32, i32
  }
  func.func @transform_7(%arg0: i32) -> (i32, i32) {
    %c0_i32 = arith.constant 0 : i32
    %c0_i32_0 = arith.constant 0 : i32
    %c0_i32_1 = arith.constant 0 : i32
    return %c0_i32, %c0_i32_0 : i32, i32
  }
  func.func @transform_8(%arg0: i32) -> (i32, i32) {
    %c0_i32 = arith.constant 0 : i32
    %c0_i32_0 = arith.constant 0 : i32
    %c0_i32_1 = arith.constant 0 : i32
    return %c0_i32, %c0_i32_0 : i32, i32
  }
  func.func @transform_9(%arg0: i32) -> (i32, i32) {
    %c0_i32 = arith.constant 0 : i32
    %c0_i32_0 = arith.constant 0 : i32
    %c0_i32_1 = arith.constant 0 : i32
    return %c0_i32, %c0_i32_0 : i32, i32
  }
  func.func @transform_10(%arg0: i32) -> (i32, i32) {
    %c0_i32 = arith.constant 0 : i32
    %c0_i32_0 = arith.constant 0 : i32
    %c0_i32_1 = arith.constant 0 : i32
    return %c0_i32, %c0_i32_0 : i32, i32
  }
  func.func @transform_11(%arg0: i32) -> (i32, i32) {
    %c0_i32 = arith.constant 0 : i32
    %c0_i32_0 = arith.constant 0 : i32
    %c0_i32_1 = arith.constant 0 : i32
    return %c0_i32, %c0_i32_0 : i32, i32
  }
  func.func @transform_12(%arg0: i32) -> (i32, i32) {
    %c0_i32 = arith.constant 0 : i32
    %c0_i32_0 = arith.constant 0 : i32
    %c0_i32_1 = arith.constant 0 : i32
    return %c0_i32, %c0_i32_0 : i32, i32
  }
  func.func @transform_13(%arg0: i32) -> (i32, i32) {
    %c0_i32 = arith.constant 0 : i32
    %c0_i32_0 = arith.constant 0 : i32
    %c0_i32_1 = arith.constant 0 : i32
    return %c0_i32, %c0_i32_0 : i32, i32
  }
  func.func @transform_14(%arg0: i32) -> (i32, i32) {
    %c0_i32 = arith.constant 0 : i32
    %c0_i32_0 = arith.constant 0 : i32
    %c0_i32_1 = arith.constant 0 : i32
    return %c0_i32, %c0_i32_0 : i32, i32
  }
  func.func @transform_15(%arg0: i32) -> (i32, i32) {
    %c0_i32 = arith.constant 0 : i32
    %c0_i32_0 = arith.constant 0 : i32
    %c0_i32_1 = arith.constant 0 : i32
    return %c0_i32, %c0_i32_0 : i32, i32
  }
  func.func @transform_16(%arg0: i32) -> (i32, i32) {
    %c0_i32 = arith.constant 0 : i32
    %c0_i32_0 = arith.constant 0 : i32
    %c0_i32_1 = arith.constant 0 : i32
    return %c0_i32, %c0_i32_0 : i32, i32
  }
  func.func @transform_17(%arg0: i32) -> (i32, i32) {
    %c0_i32 = arith.constant 0 : i32
    %c0_i32_0 = arith.constant 0 : i32
    %c0_i32_1 = arith.constant 0 : i32
    return %c0_i32, %c0_i32_0 : i32, i32
  }
  func.func @transform_18(%arg0: i32) -> (i32, i32, i32) {
    %c0_i32 = arith.constant 0 : i32
    %c0_i32_0 = arith.constant 0 : i32
    %c0_i32_1 = arith.constant 0 : i32
    return %arg0, %c0_i32, %c0_i32_0 : i32, i32, i32
  }
  func.func @transform_19(%arg0: i32) -> (i32, i32, i32) {
    %c0_i32 = arith.constant 0 : i32
    %c0_i32_0 = arith.constant 0 : i32
    %c0_i32_1 = arith.constant 0 : i32
    return %arg0, %c0_i32, %c0_i32_0 : i32, i32, i32
  }
}

</mosaic_0001>

<llo_original>
// kernel: position_attention_forward.1
$region0: #{position_attention_forward.1}
  #allocation0 [shape = 'u32[]', space=smem, size = 0x4, offset = 0x4, fixed_abs, tag = 'smem constant byte address 0x4 - core index']
  #allocation1 [shape = 'u32[144,128]{1,0:T(1,128)}', space=vmem, size = 0x12000, scoped, tag = 'internal scratch']
  %s0 = inlined_call_operand.vmem [shape: f32[2,16,32], index: 0, kind: input, shape index: {}]
  %s1 = inlined_call_operand.vmem [shape: f32[8,32], index: 1, kind: input, shape index: {}]
  %s2 = inlined_call_operand.vmem [shape: bf16[96,8], index: 2, kind: input, shape index: {}]
  %s3 = inlined_call_operand.vmem [shape: f32[1,8], index: 3, kind: input, shape index: {}]
  %s4 = inlined_call_operand.vmem [shape: bf16[24,8], index: 4, kind: input, shape index: {}]
  %s5 = inlined_call_operand.vmem [shape: f32[1,8], index: 5, kind: input, shape index: {}]
  %s6 = inlined_call_operand.vmem [shape: bf16[24,8], index: 6, kind: input, shape index: {}]
  %s7 = inlined_call_operand.vmem [shape: f32[1,8], index: 7, kind: input, shape index: {}]
  %s8 = inlined_call_operand.vmem [shape: bf16[24,8], index: 8, kind: input, shape index: {}]
  %s9 = inlined_call_operand.vmem [shape: f32[1,8], index: 9, kind: input, shape index: {}]
  %s10 = inlined_call_operand.vmem [shape: bf16[24,8], index: 10, kind: input, shape index: {}]
  %s11 = inlined_call_operand.vmem [shape: f32[1,8], index: 11, kind: input, shape index: {}]
  %s12 = inlined_call_operand.vmem [shape: bf16[24,8], index: 12, kind: input, shape index: {}]
  %s13 = inlined_call_operand.vmem [shape: f32[1,8], index: 13, kind: input, shape index: {}]
  %s14 = inlined_call_operand.vmem [shape: bf16[24,8], index: 14, kind: input, shape index: {}]
  %s15 = inlined_call_operand.vmem [shape: f32[1,8], index: 15, kind: input, shape index: {}]
  %s16 = inlined_call_operand.vmem [shape: bf16[24,32], index: 16, kind: input, shape index: {}]
  %s17 = inlined_call_operand.vmem [shape: f32[1,32], index: 17, kind: input, shape index: {}]
  %s18 = inlined_call_operand.hbm [shape: f32[2,8,32], index: 18, kind: output, shape index: {0}]
  %s19 = inlined_call_operand.hbm [shape: f32[2,8,16], index: 19, kind: output, shape index: {1}]
  %20 = xla_tuple %s18, %s19
  %s21 = sld [smem:[#allocation0]]
  $region113: #{position_attention_forward.1} parent=0
    _
  %s23 = ssub.s32 1, %s21
  %s24 = scalar_select 0, %s23, %s21
  $region1: #{position_attention_forward.1} parent=0
    #allocation2 [shape = 'u8[8192]{0}', space=vmem, size = 0x2000, scoped, tag = 'output window, operand 0']
    #allocation3 [shape = 's32[2]{0}', space=sflag, size = 0x8, scoped, tag = 'scoped memory for position_attention_forward.1']
    #allocation4 [shape = 'u8[8192]{0}', space=vmem, size = 0x2000, scoped, tag = 'output window, operand 1']
    #allocation5 [shape = 's32[2]{0}', space=sflag, size = 0x8, scoped, tag = 'scoped memory for position_attention_forward.1']
    %25 = vsyncpa [#allocation3], 0
    %s26 = scalar_lea.sflag [#allocation3], 1
    %27 = vsyncpa %s26, 0
    %28 = vsyncpa [#allocation5], 0
    %s29 = scalar_lea.sflag [#allocation5], 1
    %30 = vsyncpa %s29, 0
    loop: start=0, step=1, limit=4
    $region2: #{position_attention_forward.1} parent=1 // loop_pre_header
      _
    $region3: #{position_attention_forward.1} parent=1 // loop_header
      %s32 = sphi 0, %s36
      %p33 = scmp.ge.s32.totalorder %s32, 4
      %s42 = sphi 0, %s44
      %s45 = sphi 0, %s42
      %s46 = sphi 0, %s45
      %s62 = sphi 0, %s46
      %s66 = sphi 0, %s66
      %s68 = sphi 0, %s66
      %s69 = sphi 0, %s68
      %s83 = sphi 0, %s69
      %s87 = sphi 0, %s87
      %s89 = sphi 0, %s87
      %s90 = sphi 0, %s89
      %s104 = sphi 0, %s90
      %s108 = sphi 0, %s108
      %s110 = sphi 0, %s108
      %s111 = sphi 0, %s110
      %s125 = sphi 0, %s111
      %s129 = sphi 0, %s129
      %s131 = sphi 0, %s129
      %s132 = sphi 0, %s131
      %s146 = sphi 0, %s132
      %s150 = sphi 0, %s150
      %s152 = sphi 0, %s150
      %s153 = sphi 0, %s152
      %s167 = sphi 0, %s153
      %s171 = sphi 0, %s171
      %s173 = sphi 0, %s171
      %s174 = sphi 0, %s173
      %s188 = sphi 0, %s174
      %s192 = sphi 0, %s192
      %s194 = sphi 0, %s192
      %s195 = sphi 0, %s194
      %s209 = sphi 0, %s195
      %s213 = sphi 0, %s213
      %s215 = sphi 0, %s213
      %s216 = sphi 0, %s215
      %s230 = sphi 0, %s216
      %s234 = sphi 0, %s234
      %s236 = sphi 0, %s234
      %s237 = sphi 0, %s236
      %s251 = sphi 0, %s237
      %s255 = sphi 0, %s255
      %s257 = sphi 0, %s255
      %s258 = sphi 0, %s257
      %s272 = sphi 0, %s258
      %s276 = sphi 0, %s276
      %s278 = sphi 0, %s276
      %s279 = sphi 0, %s278
      %s293 = sphi 0, %s279
      %s297 = sphi 0, %s297
      %s299 = sphi 0, %s297
      %s300 = sphi 0, %s299
      %s314 = sphi 0, %s300
      %s318 = sphi 0, %s318
      %s320 = sphi 0, %s318
      %s321 = sphi 0, %s320
      %s335 = sphi 0, %s321
      %s339 = sphi 0, %s339
      %s341 = sphi 0, %s339
      %s342 = sphi 0, %s341
      %s356 = sphi 0, %s342
      %s360 = sphi 0, %s360
      %s362 = sphi 0, %s360
      %s363 = sphi 0, %s362
      %s377 = sphi 0, %s363
      %s381 = sphi 0, %s381
      %s383 = sphi 0, %s381
      %s384 = sphi 0, %s383
      %s398 = sphi 0, %s384
      %s402 = sphi 0, %s402
      %s404 = sphi 0, %s402
      %s405 = sphi 0, %s404
      %s419 = sphi 0, %s405
      %s425 = sphi 0, %s427
      %s428 = sphi 0, %s425
      %s429 = sphi 0, %s428
      %s445 = sphi 0, %s429
      %s451 = sphi 0, %s453
      %s454 = sphi 0, %s451
      %s455 = sphi 0, %s454
      %s471 = sphi 0, %s455
    $region4: #{position_attention_forward.1} parent=1 // loop_header_branch
      %35 = sbr.rel (%p33) target = $region8
    $region5: #{position_attention_forward.1} parent=1 // loop_body
      %s37 = ssub.s32 %s32, 1
      %s38 = ssub.s32 %s32, 2
      %s39 = sadd.s32 %s32, 1
      %s40 = ssub.s32 %s32, %s39
      %p41 = scmp.eq.s32.totalorder %s40, 0
      %s43 = sadd.s32 %s42, 1
      %s44 = scalar_select %p41, %s42, %s43
      %p47 = pneg %p41
      %p48 = scmp.eq.s32.totalorder %s32, 1
      %p49 = por %p47, %p48
      %p50 = scmp.ne.s32.totalorder %s42, %s45
      %p51 = scmp.eq.s32.totalorder %s32, 0
      %p52 = por %p50, %p51
      %p53 = scmp.ne.s32.totalorder %s42, %s45
      %p54 = scmp.eq.s32.totalorder %s37, 1
      %p55 = por %p53, %p54
      %p56 = scmp.ne.s32.totalorder %s45, %s46
      %p57 = scmp.eq.s32.totalorder %s37, 0
      %p58 = por %p56, %p57
      %p59 = scmp.ne.s32.totalorder %s45, %s46
      %p60 = scmp.eq.s32.totalorder %s38, 1
      %p61 = por %p59, %p60
      %p63 = scmp.ne.s32.totalorder %s46, %s62
      %p64 = scmp.eq.s32.totalorder %s38, 0
      %p65 = por %p63, %p64
      %s67 = sadd.s32 %s66, 1
      %p70 = scmp.eq.s32.totalorder %s32, 1
      %p71 = scmp.ne.s32.totalorder %s66, %s68
      %p72 = scmp.eq.s32.totalorder %s32, 0
      %p73 = por %p71, %p72
      %p74 = scmp.ne.s32.totalorder %s66, %s68
      %p75 = scmp.eq.s32.totalorder %s37, 1
      %p76 = por %p74, %p75
      %p77 = scmp.ne.s32.totalorder %s68, %s69
      %p78 = scmp.eq.s32.totalorder %s37, 0
      %p79 = por %p77, %p78
      %p80 = scmp.ne.s32.totalorder %s68, %s69
      %p81 = scmp.eq.s32.totalorder %s38, 1
      %p82 = por %p80, %p81
      %p84 = scmp.ne.s32.totalorder %s69, %s83
      %p85 = scmp.eq.s32.totalorder %s38, 0
      %p86 = por %p84, %p85
      %s88 = sadd.s32 %s87, 1
      %p91 = scmp.eq.s32.totalorder %s32, 1
      %p92 = scmp.ne.s32.totalorder %s87, %s89
      %p93 = scmp.eq.s32.totalorder %s32, 0
      %p94 = por %p92, %p93
      %p95 = scmp.ne.s32.totalorder %s87, %s89
      %p96 = scmp.eq.s32.totalorder %s37, 1
      %p97 = por %p95, %p96
      %p98 = scmp.ne.s32.totalorder %s89, %s90
      %p99 = scmp.eq.s32.totalorder %s37, 0
      %p100 = por %p98, %p99
      %p101 = scmp.ne.s32.totalorder %s89, %s90
      %p102 = scmp.eq.s32.totalorder %s38, 1
      %p103 = por %p101, %p102
      %p105 = scmp.ne.s32.totalorder %s90, %s104
      %p106 = scmp.eq.s32.totalorder %s38, 0
      %p107 = por %p105, %p106
      %s109 = sadd.s32 %s108, 1
      %p112 = scmp.eq.s32.totalorder %s32, 1
      %p113 = scmp.ne.s32.totalorder %s108, %s110
      %p114 = scmp.eq.s32.totalorder %s32, 0
      %p115 = por %p113, %p114
      %p116 = scmp.ne.s32.totalorder %s108, %s110
      %p117 = scmp.eq.s32.totalorder %s37, 1
      %p118 = por %p116, %p117
      %p119 = scmp.ne.s32.totalorder %s110, %s111
      %p120 = scmp.eq.s32.totalorder %s37, 0
      %p121 = por %p119, %p120
      %p122 = scmp.ne.s32.totalorder %s110, %s111
      %p123 = scmp.eq.s32.totalorder %s38, 1
      %p124 = por %p122, %p123
      %p126 = scmp.ne.s32.totalorder %s111, %s125
      %p127 = scmp.eq.s32.totalorder %s38, 0
      %p128 = por %p126, %p127
      %s130 = sadd.s32 %s129, 1
      %p133 = scmp.eq.s32.totalorder %s32, 1
      %p134 = scmp.ne.s32.totalorder %s129, %s131
      %p135 = scmp.eq.s32.totalorder %s32, 0
      %p136 = por %p134, %p135
      %p137 = scmp.ne.s32.totalorder %s129, %s131
      %p138 = scmp.eq.s32.totalorder %s37, 1
      %p139 = por %p137, %p138
      %p140 = scmp.ne.s32.totalorder %s131, %s132
      %p141 = scmp.eq.s32.totalorder %s37, 0
      %p142 = por %p140, %p141
      %p143 = scmp.ne.s32.totalorder %s131, %s132
      %p144 = scmp.eq.s32.totalorder %s38, 1
      %p145 = por %p143, %p144
      %p147 = scmp.ne.s32.totalorder %s132, %s146
      %p148 = scmp.eq.s32.totalorder %s38, 0
      %p149 = por %p147, %p148
      %s151 = sadd.s32 %s150, 1
      %p154 = scmp.eq.s32.totalorder %s32, 1
      %p155 = scmp.ne.s32.totalorder %s150, %s152
      %p156 = scmp.eq.s32.totalorder %s32, 0
      %p157 = por %p155, %p156
      %p158 = scmp.ne.s32.totalorder %s150, %s152
      %p159 = scmp.eq.s32.totalorder %s37, 1
      %p160 = por %p158, %p159
      %p161 = scmp.ne.s32.totalorder %s152, %s153
      %p162 = scmp.eq.s32.totalorder %s37, 0
      %p163 = por %p161, %p162
      %p164 = scmp.ne.s32.totalorder %s152, %s153
      %p165 = scmp.eq.s32.totalorder %s38, 1
      %p166 = por %p164, %p165
      %p168 = scmp.ne.s32.totalorder %s153, %s167
      %p169 = scmp.eq.s32.totalorder %s38, 0
      %p170 = por %p168, %p169
      %s172 = sadd.s32 %s171, 1
      %p175 = scmp.eq.s32.totalorder %s32, 1
      %p176 = scmp.ne.s32.totalorder %s171, %s173
      %p177 = scmp.eq.s32.totalorder %s32, 0
      %p178 = por %p176, %p177
      %p179 = scmp.ne.s32.totalorder %s171, %s173
      %p180 = scmp.eq.s32.totalorder %s37, 1
      %p181 = por %p179, %p180
      %p182 = scmp.ne.s32.totalorder %s173, %s174
      %p183 = scmp.eq.s32.totalorder %s37, 0
      %p184 = por %p182, %p183
      %p185 = scmp.ne.s32.totalorder %s173, %s174
      %p186 = scmp.eq.s32.totalorder %s38, 1
      %p187 = por %p185, %p186
      %p189 = scmp.ne.s32.totalorder %s174, %s188
      %p190 = scmp.eq.s32.totalorder %s38, 0
      %p191 = por %p189, %p190
      %s193 = sadd.s32 %s192, 1
      %p196 = scmp.eq.s32.totalorder %s32, 1
      %p197 = scmp.ne.s32.totalorder %s192, %s194
      %p198 = scmp.eq.s32.totalorder %s32, 0
      %p199 = por %p197, %p198
      %p200 = scmp.ne.s32.totalorder %s192, %s194
      %p201 = scmp.eq.s32.totalorder %s37, 1
      %p202 = por %p200, %p201
      %p203 = scmp.ne.s32.totalorder %s194, %s195
      %p204 = scmp.eq.s32.totalorder %s37, 0
      %p205 = por %p203, %p204
      %p206 = scmp.ne.s32.totalorder %s194, %s195
      %p207 = scmp.eq.s32.totalorder %s38, 1
      %p208 = por %p206, %p207
      %p210 = scmp.ne.s32.totalorder %s195, %s209
      %p211 = scmp.eq.s32.totalorder %s38, 0
      %p212 = por %p210, %p211
      %s214 = sadd.s32 %s213, 1
      %p217 = scmp.eq.s32.totalorder %s32, 1
      %p218 = scmp.ne.s32.totalorder %s213, %s215
      %p219 = scmp.eq.s32.totalorder %s32, 0
      %p220 = por %p218, %p219
      %p221 = scmp.ne.s32.totalorder %s213, %s215
      %p222 = scmp.eq.s32.totalorder %s37, 1
      %p223 = por %p221, %p222
      %p224 = scmp.ne.s32.totalorder %s215, %s216
      %p225 = scmp.eq.s32.totalorder %s37, 0
      %p226 = por %p224, %p225
      %p227 = scmp.ne.s32.totalorder %s215, %s216
      %p228 = scmp.eq.s32.totalorder %s38, 1
      %p229 = por %p227, %p228
      %p231 = scmp.ne.s32.totalorder %s216, %s230
      %p232 = scmp.eq.s32.totalorder %s38, 0
      %p233 = por %p231, %p232
      %s235 = sadd.s32 %s234, 1
      %p238 = scmp.eq.s32.totalorder %s32, 1
      %p239 = scmp.ne.s32.totalorder %s234, %s236
      %p240 = scmp.eq.s32.totalorder %s32, 0
      %p241 = por %p239, %p240
      %p242 = scmp.ne.s32.totalorder %s234, %s236
      %p243 = scmp.eq.s32.totalorder %s37, 1
      %p244 = por %p242, %p243
      %p245 = scmp.ne.s32.totalorder %s236, %s237
      %p246 = scmp.eq.s32.totalorder %s37, 0
      %p247 = por %p245, %p246
      %p248 = scmp.ne.s32.totalorder %s236, %s237
      %p249 = scmp.eq.s32.totalorder %s38, 1
      %p250 = por %p248, %p249
      %p252 = scmp.ne.s32.totalorder %s237, %s251
      %p253 = scmp.eq.s32.totalorder %s38, 0
      %p254 = por %p252, %p253
      %s256 = sadd.s32 %s255, 1
      %p259 = scmp.eq.s32.totalorder %s32, 1
      %p260 = scmp.ne.s32.totalorder %s255, %s257
      %p261 = scmp.eq.s32.totalorder %s32, 0
      %p262 = por %p260, %p261
      %p263 = scmp.ne.s32.totalorder %s255, %s257
      %p264 = scmp.eq.s32.totalorder %s37, 1
      %p265 = por %p263, %p264
      %p266 = scmp.ne.s32.totalorder %s257, %s258
      %p267 = scmp.eq.s32.totalorder %s37, 0
      %p268 = por %p266, %p267
      %p269 = scmp.ne.s32.totalorder %s257, %s258
      %p270 = scmp.eq.s32.totalorder %s38, 1
      %p271 = por %p269, %p270
      %p273 = scmp.ne.s32.totalorder %s258, %s272
      %p274 = scmp.eq.s32.totalorder %s38, 0
      %p275 = por %p273, %p274
      %s277 = sadd.s32 %s276, 1
      %p280 = scmp.eq.s32.totalorder %s32, 1
      %p281 = scmp.ne.s32.totalorder %s276, %s278
      %p282 = scmp.eq.s32.totalorder %s32, 0
      %p283 = por %p281, %p282
      %p284 = scmp.ne.s32.totalorder %s276, %s278
      %p285 = scmp.eq.s32.totalorder %s37, 1
      %p286 = por %p284, %p285
      %p287 = scmp.ne.s32.totalorder %s278, %s279
      %p288 = scmp.eq.s32.totalorder %s37, 0
      %p289 = por %p287, %p288
      %p290 = scmp.ne.s32.totalorder %s278, %s279
      %p291 = scmp.eq.s32.totalorder %s38, 1
      %p292 = por %p290, %p291
      %p294 = scmp.ne.s32.totalorder %s279, %s293
      %p295 = scmp.eq.s32.totalorder %s38, 0
      %p296 = por %p294, %p295
      %s298 = sadd.s32 %s297, 1
      %p301 = scmp.eq.s32.totalorder %s32, 1
      %p302 = scmp.ne.s32.totalorder %s297, %s299
      %p303 = scmp.eq.s32.totalorder %s32, 0
      %p304 = por %p302, %p303
      %p305 = scmp.ne.s32.totalorder %s297, %s299
      %p306 = scmp.eq.s32.totalorder %s37, 1
      %p307 = por %p305, %p306
      %p308 = scmp.ne.s32.totalorder %s299, %s300
      %p309 = scmp.eq.s32.totalorder %s37, 0
      %p310 = por %p308, %p309
      %p311 = scmp.ne.s32.totalorder %s299, %s300
      %p312 = scmp.eq.s32.totalorder %s38, 1
      %p313 = por %p311, %p312
      %p315 = scmp.ne.s32.totalorder %s300, %s314
      %p316 = scmp.eq.s32.totalorder %s38, 0
      %p317 = por %p315, %p316
      %s319 = sadd.s32 %s318, 1
      %p322 = scmp.eq.s32.totalorder %s32, 1
      %p323 = scmp.ne.s32.totalorder %s318, %s320
      %p324 = scmp.eq.s32.totalorder %s32, 0
      %p325 = por %p323, %p324
      %p326 = scmp.ne.s32.totalorder %s318, %s320
      %p327 = scmp.eq.s32.totalorder %s37, 1
      %p328 = por %p326, %p327
      %p329 = scmp.ne.s32.totalorder %s320, %s321
      %p330 = scmp.eq.s32.totalorder %s37, 0
      %p331 = por %p329, %p330
      %p332 = scmp.ne.s32.totalorder %s320, %s321
      %p333 = scmp.eq.s32.totalorder %s38, 1
      %p334 = por %p332, %p333
      %p336 = scmp.ne.s32.totalorder %s321, %s335
      %p337 = scmp.eq.s32.totalorder %s38, 0
      %p338 = por %p336, %p337
      %s340 = sadd.s32 %s339, 1
      %p343 = scmp.eq.s32.totalorder %s32, 1
      %p344 = scmp.ne.s32.totalorder %s339, %s341
      %p345 = scmp.eq.s32.totalorder %s32, 0
      %p346 = por %p344, %p345
      %p347 = scmp.ne.s32.totalorder %s339, %s341
      %p348 = scmp.eq.s32.totalorder %s37, 1
      %p349 = por %p347, %p348
      %p350 = scmp.ne.s32.totalorder %s341, %s342
      %p351 = scmp.eq.s32.totalorder %s37, 0
      %p352 = por %p350, %p351
      %p353 = scmp.ne.s32.totalorder %s341, %s342
      %p354 = scmp.eq.s32.totalorder %s38, 1
      %p355 = por %p353, %p354
      %p357 = scmp.ne.s32.totalorder %s342, %s356
      %p358 = scmp.eq.s32.totalorder %s38, 0
      %p359 = por %p357, %p358
      %s361 = sadd.s32 %s360, 1
      %p364 = scmp.eq.s32.totalorder %s32, 1
      %p365 = scmp.ne.s32.totalorder %s360, %s362
      %p366 = scmp.eq.s32.totalorder %s32, 0
      %p367 = por %p365, %p366
      %p368 = scmp.ne.s32.totalorder %s360, %s362
      %p369 = scmp.eq.s32.totalorder %s37, 1
      %p370 = por %p368, %p369
      %p371 = scmp.ne.s32.totalorder %s362, %s363
      %p372 = scmp.eq.s32.totalorder %s37, 0
      %p373 = por %p371, %p372
      %p374 = scmp.ne.s32.totalorder %s362, %s363
      %p375 = scmp.eq.s32.totalorder %s38, 1
      %p376 = por %p374, %p375
      %p378 = scmp.ne.s32.totalorder %s363, %s377
      %p379 = scmp.eq.s32.totalorder %s38, 0
      %p380 = por %p378, %p379
      %s382 = sadd.s32 %s381, 1
      %p385 = scmp.eq.s32.totalorder %s32, 1
      %p386 = scmp.ne.s32.totalorder %s381, %s383
      %p387 = scmp.eq.s32.totalorder %s32, 0
      %p388 = por %p386, %p387
      %p389 = scmp.ne.s32.totalorder %s381, %s383
      %p390 = scmp.eq.s32.totalorder %s37, 1
      %p391 = por %p389, %p390
      %p392 = scmp.ne.s32.totalorder %s383, %s384
      %p393 = scmp.eq.s32.totalorder %s37, 0
      %p394 = por %p392, %p393
      %p395 = scmp.ne.s32.totalorder %s383, %s384
      %p396 = scmp.eq.s32.totalorder %s38, 1
      %p397 = por %p395, %p396
      %p399 = scmp.ne.s32.totalorder %s384, %s398
      %p400 = scmp.eq.s32.totalorder %s38, 0
      %p401 = por %p399, %p400
      %s403 = sadd.s32 %s402, 1
      %p406 = scmp.eq.s32.totalorder %s32, 1
      %p407 = scmp.ne.s32.totalorder %s402, %s404
      %p408 = scmp.eq.s32.totalorder %s32, 0
      %p409 = por %p407, %p408
      %p410 = scmp.ne.s32.totalorder %s402, %s404
      %p411 = scmp.eq.s32.totalorder %s37, 1
      %p412 = por %p410, %p411
      %p413 = scmp.ne.s32.totalorder %s404, %s405
      %p414 = scmp.eq.s32.totalorder %s37, 0
      %p415 = por %p413, %p414
      %p416 = scmp.ne.s32.totalorder %s404, %s405
      %p417 = scmp.eq.s32.totalorder %s38, 1
      %p418 = por %p416, %p417
      %p420 = scmp.ne.s32.totalorder %s405, %s419
      %p421 = scmp.eq.s32.totalorder %s38, 0
      %p422 = por %p420, %p421
      %s423 = ssub.s32 %s32, %s39
      %p424 = scmp.eq.s32.totalorder %s423, 0
      %s426 = sadd.s32 %s425, 1
      %s427 = scalar_select %p424, %s425, %s426
      %p430 = pneg %p424
      %p431 = scmp.eq.s32.totalorder %s32, 1
      %p432 = por %p430, %p431
      %p433 = scmp.ne.s32.totalorder %s425, %s428
      %p434 = scmp.eq.s32.totalorder %s32, 0
      %p435 = por %p433, %p434
      %p436 = scmp.ne.s32.totalorder %s425, %s428
      %p437 = scmp.eq.s32.totalorder %s37, 1
      %p438 = por %p436, %p437
      %p439 = scmp.ne.s32.totalorder %s428, %s429
      %p440 = scmp.eq.s32.totalorder %s37, 0
      %p441 = por %p439, %p440
      %p442 = scmp.ne.s32.totalorder %s428, %s429
      %p443 = scmp.eq.s32.totalorder %s38, 1
      %p444 = por %p442, %p443
      %p446 = scmp.ne.s32.totalorder %s429, %s445
      %p447 = scmp.eq.s32.totalorder %s38, 0
      %p448 = por %p446, %p447
      %s449 = ssub.s32 %s32, %s39
      %p450 = scmp.eq.s32.totalorder %s449, 0
      %s452 = sadd.s32 %s451, 1
      %s453 = scalar_select %p450, %s451, %s452
      %p456 = pneg %p450
      %p457 = scmp.eq.s32.totalorder %s32, 1
      %p458 = por %p456, %p457
      %p459 = scmp.ne.s32.totalorder %s451, %s454
      %p460 = scmp.eq.s32.totalorder %s32, 0
      %p461 = por %p459, %p460
      %p462 = scmp.ne.s32.totalorder %s451, %s454
      %p463 = scmp.eq.s32.totalorder %s37, 1
      %p464 = por %p462, %p463
      %p465 = scmp.ne.s32.totalorder %s454, %s455
      %p466 = scmp.eq.s32.totalorder %s37, 0
      %p467 = por %p465, %p466
      %p468 = scmp.ne.s32.totalorder %s454, %s455
      %p469 = scmp.eq.s32.totalorder %s38, 1
      %p470 = por %p468, %p469
      %p472 = scmp.ne.s32.totalorder %s455, %s471
      %p473 = scmp.eq.s32.totalorder %s38, 0
      %p474 = por %p472, %p473
      %p475 = scmp.le.s32.totalorder 1, %s32
      %p476 = scmp.lt.s32.totalorder %s32, 3
      %p477 = pnand %p475, %p476
      %p478 = pneg %p477
      // Predicated region
      $region9: #{position_attention_forward.1} parent=5 // pred_check
        _
      $region10: #{position_attention_forward.1} parent=5 // pred_check_branch
        %480 = sbr.rel (%p477) target = $region12
      $region11: #{position_attention_forward.1} parent=5 // pred_region
        %s481 = ssub.s32 %s32, 1
        // Predicated region
        $region13: #{position_attention_forward.1} parent=11 // pred_check
          %p482 = pneg %p79
        $region14: #{position_attention_forward.1} parent=11 // pred_check_branch
          %484 = sbr.rel (%p482) target = $region16
        $region15: #{position_attention_forward.1} parent=11 // pred_region
          _
        $region16: #{position_attention_forward.1} parent=11 // pred_fallthru
          _
        // Predicated region
        $region17: #{position_attention_forward.1} parent=11 // pred_check
          %p485 = pneg %p100
        $region18: #{position_attention_forward.1} parent=11 // pred_check_branch
          %487 = sbr.rel (%p485) target = $region20
        $region19: #{position_attention_forward.1} parent=11 // pred_region
          _
        $region20: #{position_attention_forward.1} parent=11 // pred_fallthru
          _
        // Predicated region
        $region21: #{position_attention_forward.1} parent=11 // pred_check
          %p488 = pneg %p121
        $region22: #{position_attention_forward.1} parent=11 // pred_check_branch
          %490 = sbr.rel (%p488) target = $region24
        $region23: #{position_attention_forward.1} parent=11 // pred_region
          _
        $region24: #{position_attention_forward.1} parent=11 // pred_fallthru
          _
        // Predicated region
        $region25: #{position_attention_forward.1} parent=11 // pred_check
          %p491 = pneg %p142
        $region26: #{position_attention_forward.1} parent=11 // pred_check_branch
          %493 = sbr.rel (%p491) target = $region28
        $region27: #{position_attention_forward.1} parent=11 // pred_region
          _
        $region28: #{position_attention_forward.1} parent=11 // pred_fallthru
          _
        // Predicated region
        $region29: #{position_attention_forward.1} parent=11 // pred_check
          %p494 = pneg %p163
        $region30: #{position_attention_forward.1} parent=11 // pred_check_branch
          %496 = sbr.rel (%p494) target = $region32
        $region31: #{position_attention_forward.1} parent=11 // pred_region
          _
        $region32: #{position_attention_forward.1} parent=11 // pred_fallthru
          _
        // Predicated region
        $region33: #{position_attention_forward.1} parent=11 // pred_check
          %p497 = pneg %p184
        $region34: #{position_attention_forward.1} parent=11 // pred_check_branch
          %499 = sbr.rel (%p497) target = $region36
        $region35: #{position_attention_forward.1} parent=11 // pred_region
          _
        $region36: #{position_attention_forward.1} parent=11 // pred_fallthru
          _
        // Predicated region
        $region37: #{position_attention_forward.1} parent=11 // pred_check
          %p500 = pneg %p205
        $region38: #{position_attention_forward.1} parent=11 // pred_check_branch
          %502 = sbr.rel (%p500) target = $region40
        $region39: #{position_attention_forward.1} parent=11 // pred_region
          _
        $region40: #{position_attention_forward.1} parent=11 // pred_fallthru
          _
        // Predicated region
        $region41: #{position_attention_forward.1} parent=11 // pred_check
          %p503 = pneg %p226
        $region42: #{position_attention_forward.1} parent=11 // pred_check_branch
          %505 = sbr.rel (%p503) target = $region44
        $region43: #{position_attention_forward.1} parent=11 // pred_region
          _
        $region44: #{position_attention_forward.1} parent=11 // pred_fallthru
          _
        // Predicated region
        $region45: #{position_attention_forward.1} parent=11 // pred_check
          %p506 = pneg %p247
        $region46: #{position_attention_forward.1} parent=11 // pred_check_branch
          %508 = sbr.rel (%p506) target = $region48
        $region47: #{position_attention_forward.1} parent=11 // pred_region
          _
        $region48: #{position_attention_forward.1} parent=11 // pred_fallthru
          _
        // Predicated region
        $region49: #{position_attention_forward.1} parent=11 // pred_check
          %p509 = pneg %p268
        $region50: #{position_attention_forward.1} parent=11 // pred_check_branch
          %511 = sbr.rel (%p509) target = $region52
        $region51: #{position_attention_forward.1} parent=11 // pred_region
          _
        $region52: #{position_attention_forward.1} parent=11 // pred_fallthru
          _
        // Predicated region
        $region53: #{position_attention_forward.1} parent=11 // pred_check
          %p512 = pneg %p289
        $region54: #{position_attention_forward.1} parent=11 // pred_check_branch
          %514 = sbr.rel (%p512) target = $region56
        $region55: #{position_attention_forward.1} parent=11 // pred_region
          _
        $region56: #{position_attention_forward.1} parent=11 // pred_fallthru
          _
        // Predicated region
        $region57: #{position_attention_forward.1} parent=11 // pred_check
          %p515 = pneg %p310
        $region58: #{position_attention_forward.1} parent=11 // pred_check_branch
          %517 = sbr.rel (%p515) target = $region60
        $region59: #{position_attention_forward.1} parent=11 // pred_region
          _
        $region60: #{position_attention_forward.1} parent=11 // pred_fallthru
          _
        // Predicated region
        $region61: #{position_attention_forward.1} parent=11 // pred_check
          %p518 = pneg %p331
        $region62: #{position_attention_forward.1} parent=11 // pred_check_branch
          %520 = sbr.rel (%p518) target = $region64
        $region63: #{position_attention_forward.1} parent=11 // pred_region
          _
        $region64: #{position_attention_forward.1} parent=11 // pred_fallthru
          _
        // Predicated region
        $region65: #{position_attention_forward.1} parent=11 // pred_check
          %p521 = pneg %p352
        $region66: #{position_attention_forward.1} parent=11 // pred_check_branch
          %523 = sbr.rel (%p521) target = $region68
        $region67: #{position_attention_forward.1} parent=11 // pred_region
          _
        $region68: #{position_attention_forward.1} parent=11 // pred_fallthru
          _
        // Predicated region
        $region69: #{position_attention_forward.1} parent=11 // pred_check
          %p524 = pneg %p373
        $region70: #{position_attention_forward.1} parent=11 // pred_check_branch
          %526 = sbr.rel (%p524) target = $region72
        $region71: #{position_attention_forward.1} parent=11 // pred_region
          _
        $region72: #{position_attention_forward.1} parent=11 // pred_fallthru
          _
        // Predicated region
        $region73: #{position_attention_forward.1} parent=11 // pred_check
          %p527 = pneg %p394
        $region74: #{position_attention_forward.1} parent=11 // pred_check_branch
          %529 = sbr.rel (%p527) target = $region76
        $region75: #{position_attention_forward.1} parent=11 // pred_region
          _
        $region76: #{position_attention_forward.1} parent=11 // pred_fallthru
          _
        // Predicated region
        $region77: #{position_attention_forward.1} parent=11 // pred_check
          %p530 = pneg %p415
        $region78: #{position_attention_forward.1} parent=11 // pred_check_branch
          %532 = sbr.rel (%p530) target = $region80
        $region79: #{position_attention_forward.1} parent=11 // pred_region
          _
        $region80: #{position_attention_forward.1} parent=11 // pred_fallthru
          _
      $region12: #{position_attention_forward.1} parent=5 // pred_fallthru
        _
      %p533 = scmp.lt.s32.totalorder %s32, 2
      // Predicated region
      $region81: #{position_attention_forward.1} parent=5 // pred_check
        %p534 = pneg %p533
      $region82: #{position_attention_forward.1} parent=5 // pred_check_branch
        %536 = sbr.rel (%p534) target = $region84
      $region83: #{position_attention_forward.1} parent=5 // pred_region
        // Predicated region
        $region85: #{position_attention_forward.1} parent=83 // pred_check
          %p537 = pneg %p52
        $region86: #{position_attention_forward.1} parent=83 // pred_check_branch
          %539 = sbr.rel (%p537) target = $region88
        $region87: #{position_attention_forward.1} parent=83 // pred_region
          %p540 = scmp.lt.s32.totalorder %s32, 1
          %s541 = scalar_select %p540, %s32, 1
          %s542 = smul.addr %s541, 2
          %s543 = smul.addr %s542, 8
          %s544 = scalar_lea.vmem %s0, %s543
        $region88: #{position_attention_forward.1} parent=83 // pred_fallthru
          _
      $region84: #{position_attention_forward.1} parent=5 // pred_fallthru
        _
      %p545 = scmp.le.s32.totalorder 1, %s32
      %p546 = scmp.lt.s32.totalorder %s32, 3
      %p547 = pnand %p545, %p546
      %p548 = pneg %p547
      // Predicated region
      $region89: #{position_attention_forward.1} parent=5 // pred_check
        _
      $region90: #{position_attention_forward.1} parent=5 // pred_check_branch
        %550 = sbr.rel (%p547) target = $region92
      $region91: #{position_attention_forward.1} parent=5 // pred_region
        %s551 = ssub.s32 %s32, 1
        %p552 = scmp.lt.s32.totalorder %s37, 1
        %s553 = scalar_select %p552, %s37, 1
        %s554 = smul.addr %s553, 2
        %s555 = smul.addr %s554, 8
        %s556 = scalar_lea.vmem %s0, %s555
        %p557 = pneg %p58
        %p558 = pneg %p55
        %p559 = pneg %p79
        %p560 = pneg %p76
        %p561 = pneg %p100
        %p562 = pneg %p97
        %p563 = pneg %p121
        %p564 = pneg %p118
        %p565 = pneg %p142
        %p566 = pneg %p139
        %p567 = pneg %p163
        %p568 = pneg %p160
        %p569 = pneg %p184
        %p570 = pneg %p181
        %p571 = pneg %p205
        %p572 = pneg %p202
        %p573 = pneg %p226
        %p574 = pneg %p223
        %p575 = pneg %p247
        %p576 = pneg %p244
        %p577 = pneg %p268
        %p578 = pneg %p265
        %p579 = pneg %p289
        %p580 = pneg %p286
        %p581 = pneg %p310
        %p582 = pneg %p307
        %p583 = pneg %p331
        %p584 = pneg %p328
        %p585 = pneg %p352
        %p586 = pneg %p349
        %p587 = pneg %p373
        %p588 = pneg %p370
        %p589 = pneg %p394
        %p590 = pneg %p391
        %p591 = pneg %p415
        %p592 = pneg %p412
        %p593 = pneg %p441
        %p594 = pneg %p438
        %s595 = sand.u32 %s428, 1
        %s596 = scalar_lea.sflag [#allocation3], %s595
        %s597 = sand.u32 %s428, 1
        %s598 = smul.addr %s597, 8
        %s599 = scalar_lea.vmem [#allocation2], %s598
        %p600 = pneg %p467
        %p601 = pneg %p464
        %s602 = sand.u32 %s454, 1
        %s603 = scalar_lea.sflag [#allocation5], %s602
        %s604 = sand.u32 %s454, 1
        %s605 = smul.addr %s604, 8
        %s606 = scalar_lea.vmem [#allocation4], %s605
        %p607 = scmp.lt.s32.totalorder %s37, 1
        %s608 = scalar_select %p607, %s37, 1
        %s609 = smul.addr %s608, 2
        %s610 = smul.addr %s609, 8
        %s611 = scalar_lea.vmem %s0, %s610
        %v613 = vld [vmem:[%s611] sm:$0xff]
        %v614 = vld [vmem:[%s611 + $0x8] sm:$0xff]
        %v615 = vlaneseq
        %v616 = vshrl.u32 %v615, 7
        %v617 = vlaneseq
        %v618 = vand.u32 %v617, 127
        %v619 = vmul.u32 %v616, 2
        %vm620 = vcmp.eq.s32.totalorder %v618, %v619
        %v621 = vsel %vm620, 1, 0
        %v622 = vcvt.s32.f32 %v621
        %vm625 = vcmask 1040384
        %v626 = vrot.slane %v613, 7
        %v627 = vrot.slane %v614, 7
        %v628 = vsel %vm625, %v626, %v627
        %v632 = vsel %vm625, 0.0, %v626
        %v633 = vsel %vm625, %v627, 0.0
        %vm636 = vcmask 1046528
        %v637 = vrot.slane %v632, 1
        %v638 = vrot.slane %v628, 1
        %v639 = vsel %vm636, %v637, %v638
        %v640 = vrot.slane %v633, 1
        %v641 = vsel %vm636, %v638, %v640
        %642 = vrot.lane.b32.xlu0 %v639, 32
        %v643 = vpop.permute.xlu0 %642
        %644 = vrot.lane.b32.xlu0 %v641, 32
        %v645 = vpop.permute.xlu0 %644
        %vm648 = vcmask 1045504
        %v649 = vrot.slane %v632, 2
        %v650 = vrot.slane %v628, 2
        %v651 = vsel %vm648, %v649, %v650
        %v652 = vrot.slane %v633, 2
        %v653 = vsel %vm648, %v650, %v652
        %654 = vrot.lane.b32.xlu0 %v651, 64
        %v655 = vpop.permute.xlu0 %654
        %656 = vrot.lane.b32.xlu0 %v653, 64
        %v657 = vpop.permute.xlu0 %656
        %vm660 = vcmask 261120
        %v661 = vsel %vm660, %v632, %v643
        %v662 = vsel %vm660, %v628, %v645
        %vm663 = vcmask 523264
        %v664 = vsel %vm663, %v661, %v655
        %v665 = vsel %vm663, %v662, %v657
        %vm666 = vcmask 130048
        %v668 = vsel %vm666, %v622, 0
        %670 = vmatprep.subr.mxu0 0.0
        %671 = vmatpush1.msra.mxu0 %v664
        %672 = vmatprep.subr.mxu0 0.0
        %673 = vmatpush1.msra.mxu0 %v665
        %674 = vmatprep.subr.mxu0 0.0
        %675 = vmatpush1.msra.mxu0 0.0
        %676 = vmatprep.subr.mxu0 0.0
        %677 = vmatpush1.msra.mxu0 0.0
        %678 = vmatprep.subr.mxu0 0.0
        %679 = vmatpush1.msra.mxu0 0.0
        %680 = vmatprep.subr.mxu0 0.0
        %681 = vmatpush1.msra.mxu0 0.0
        %682 = vmatprep.subr.mxu0 0.0
        %683 = vmatpush1.msra.mxu0 0.0
        %684 = vmatprep.subr.mxu0 0.0
        %685 = vmatpush1.msra.mxu0 0.0
        %686 = vmatprep.subr.mxu0 0.0
        %687 = vmatpush1.msra.mxu0 0.0
        %688 = vmatprep.subr.mxu0 0.0
        %689 = vmatpush1.msra.mxu0 0.0
        %690 = vmatprep.subr.mxu0 0.0
        %691 = vmatpush1.msra.mxu0 0.0
        %692 = vmatprep.subr.mxu0 0.0
        %693 = vmatpush1.msra.mxu0 0.0
        %694 = vmatprep.subr.mxu0 0.0
        %695 = vmatpush1.msra.mxu0 0.0
        %696 = vmatprep.subr.mxu0 0.0
        %697 = vmatpush1.msra.mxu0 0.0
        %698 = vmatprep.subr.mxu0 0.0
        %699 = vmatpush1.msra.mxu0 0.0
        %700 = vmatprep.subr.mxu0 0.0
        %701 = vmatpush1.msra.mxu0 0.0
        %702 = vmatprep.subr.mxu0 0.0
        %703 = vmatpush1.msra.mxu0 0.0
        %704 = vmatprep.subr.mxu0 0.0
        %705 = vmatpush1.msra.mxu0 0.0
        %706 = vmatprep.subr.mxu0 0.0
        %707 = vmatpush1.msra.mxu0 0.0
        %708 = vmatprep.subr.mxu0 0.0
        %709 = vmatpush1.msra.mxu0 0.0
        %710 = vmatprep.subr.mxu0 0.0
        %711 = vmatpush1.msra.mxu0 0.0
        %712 = vmatprep.subr.mxu0 0.0
        %713 = vmatpush1.msra.mxu0 0.0
        %714 = vmatprep.subr.mxu0 0.0
        %715 = vmatpush1.msra.mxu0 0.0
        %716 = vmatprep.subr.mxu0 0.0
        %717 = vmatpush1.msra.mxu0 0.0
        %718 = vmatprep.subr.mxu0 0.0
        %719 = vmatpush1.msra.mxu0 0.0
        %720 = vmatprep.subr.mxu0 0.0
        %721 = vmatpush1.msra.mxu0 0.0
        %722 = vmatprep.subr.mxu0 0.0
        %723 = vmatpush1.msra.mxu0 0.0
        %724 = vmatprep.subr.mxu0 0.0
        %725 = vmatpush1.msra.mxu0 0.0
        %726 = vmatprep.subr.mxu0 0.0
        %727 = vmatpush1.msra.mxu0 0.0
        %728 = vmatprep.subr.mxu0 0.0
        %729 = vmatpush1.msra.mxu0 0.0
        %730 = vmatprep.subr.mxu0 0.0
        %731 = vmatpush1.msra.mxu0 0.0
        %732 = vmatprep.subr.mxu0 0.0
        %733 = vmatpush1.msra.mxu0 0.0
        %734 = vmatprep.mubr.f32.mxu0 0.0
        %735 = vmatmul.mubr.f32.gmra.mrb[0].mxu0 %v668
        %v736 = vpop.f32.mrb[0].mxu0
        %v737 = vadd.f32 0.0, %v736
        %v738 = vpop.f32.mrb[0].mxu0
        %739 = vdwg.mxu0
        %v740 = vpack.c.bf16 %v737, %v737
        %v741 = vld [vmem:[%s2] sm:$0xf]
        %v742 = vld [vmem:[%s2 + $0x4] sm:$0xf]
        %v743 = vld [vmem:[%s2 + $0x8] sm:$0xf]
        %v744 = vld [vmem:[%s2 + $0xc] sm:$0xf]
        %v745 = vld [vmem:[%s2 + $0x10] sm:$0xf]
        %v746 = vld [vmem:[%s2 + $0x14] sm:$0xf]
        %v747 = vld [vmem:[%s2 + $0x18] sm:$0xf]
        %v748 = vld [vmem:[%s2 + $0x1c] sm:$0xf]
        %v749 = vld [vmem:[%s2 + $0x20] sm:$0xf]
        %v750 = vld [vmem:[%s2 + $0x24] sm:$0xf]
        %v751 = vld [vmem:[%s2 + $0x28] sm:$0xf]
        %v752 = vld [vmem:[%s2 + $0x2c] sm:$0xf]
        %v753 = vld [vmem:[%s3] sm:$0x1]
        %v755 = vlaneseq
        %v756 = vshrl.u32 %v755, 7
        %v757 = vsub.s32 0, %v756
        %v758 = vrot.slane %v753, %v757
        %v772 = vunpack.c.l.b16 %v741
        %v773 = vunpack.c.l.b16 %v742
        %v774 = vunpack.c.l.b16 %v743
        %v775 = vunpack.c.l.b16 %v744
        %v776 = vunpack.c.l.b16 %v745
        %v777 = vunpack.c.l.b16 %v746
        %v778 = vunpack.c.l.b16 %v747
        %v779 = vunpack.c.l.b16 %v748
        %v780 = vunpack.c.l.b16 %v749
        %v781 = vunpack.c.l.b16 %v750
        %v782 = vunpack.c.l.b16 %v751
        %v783 = vunpack.c.l.b16 %v752
        %v784 = vpack.c.b16 %v773, %v772
        %v785 = vpack.c.b16 %v775, %v774
        %v786 = vpack.c.b16 %v777, %v776
        %v787 = vpack.c.b16 %v779, %v778
        %v788 = vpack.c.b16 %v781, %v780
        %v789 = vpack.c.b16 %v783, %v782
        %vm796 = vcmask 785408
        %v798 = vsel %vm796, %v740, 0
        %800 = vmatprep.subr.bf16.mxu0 0
        %801 = vmatpush1.bf16.msra.mxu0 %v784
        %802 = vmatprep.subr.bf16.mxu0 0
        %803 = vmatpush1.bf16.msra.mxu0 %v785
        %804 = vmatprep.subr.bf16.mxu0 0
        %805 = vmatpush1.bf16.msra.mxu0 %v786
        %806 = vmatprep.subr.bf16.mxu0 0
        %807 = vmatpush1.bf16.msra.mxu0 %v787
        %808 = vmatprep.subr.bf16.mxu0 0
        %809 = vmatpush1.bf16.msra.mxu0 %v788
        %810 = vmatprep.subr.bf16.mxu0 0
        %811 = vmatpush1.bf16.msra.mxu0 %v789
        %812 = vmatprep.subr.bf16.mxu0 0
        %813 = vmatpush1.bf16.msra.mxu0 0
        %814 = vmatprep.subr.bf16.mxu0 0
        %815 = vmatpush1.bf16.msra.mxu0 0
        %816 = vmatprep.subr.bf16.mxu0 0
        %817 = vmatpush1.bf16.msra.mxu0 0
        %818 = vmatprep.subr.bf16.mxu0 0
        %819 = vmatpush1.bf16.msra.mxu0 0
        %820 = vmatprep.subr.bf16.mxu0 0
        %821 = vmatpush1.bf16.msra.mxu0 0
        %822 = vmatprep.subr.bf16.mxu0 0
        %823 = vmatpush1.bf16.msra.mxu0 0
        %824 = vmatprep.subr.bf16.mxu0 0
        %825 = vmatpush1.bf16.msra.mxu0 0
        %826 = vmatprep.subr.bf16.mxu0 0
        %827 = vmatpush1.bf16.msra.mxu0 0
        %828 = vmatprep.subr.bf16.mxu0 0
        %829 = vmatpush1.bf16.msra.mxu0 0
        %830 = vmatprep.subr.bf16.mxu0 0
        %831 = vmatpush1.bf16.msra.mxu0 0
        %832 = vmatprep.mubr.bf16.mxu0 0
        %833 = vmatmul.mubr.bf16.gmra.mrb[0].mxu0 %v798
        %v834 = vpop.f32.mrb[0].mxu0
        %v835 = vadd.f32 %v758, %v834
        %v836 = vpop.f32.mrb[0].mxu0
        %v837 = vpop.f32.mrb[0].mxu0
        %v838 = vpop.f32.mrb[0].mxu0
        %839 = vdwg.mxu0
        %v840 = vmax.f32 %v835, 0.0
        %v842 = vrot.slane %v840, 7
        %v844 = vsel %vm625, 0.0, %v842
        %v845 = vsel %vm625, %v842, 0.0
        %v848 = vrot.slane %v844, 1
        %v849 = vrot.slane %v845, 1
        %v850 = vsel %vm636, %v848, %v849
        %851 = vrot.lane.b32.xlu0 %v850, 8
        %v852 = vpop.permute.xlu0 %851
        %v854 = vrot.slane %v844, 2
        %v855 = vrot.slane %v845, 2
        %v856 = vsel %vm648, %v854, %v855
        %857 = vrot.lane.b32.xlu0 %v856, 16
        %v858 = vpop.permute.xlu0 %857
        %vm860 = vcmask 64512
        %v861 = vsel %vm860, %v844, %v852
        %v862 = vsel %vm666, %v861, %v858
        %v863 = vsel %vm860, %v622, 0
        %865 = vmatprep.subr.mxu0 0.0
        %866 = vmatpush1.msra.mxu0 %v862
        %867 = vmatprep.subr.mxu0 0.0
        %868 = vmatpush1.msra.mxu0 0.0
        %869 = vmatprep.subr.mxu0 0.0
        %870 = vmatpush1.msra.mxu0 0.0
        %871 = vmatprep.subr.mxu0 0.0
        %872 = vmatpush1.msra.mxu0 0.0
        %873 = vmatprep.subr.mxu0 0.0
        %874 = vmatpush1.msra.mxu0 0.0
        %875 = vmatprep.subr.mxu0 0.0
        %876 = vmatpush1.msra.mxu0 0.0
        %877 = vmatprep.subr.mxu0 0.0
        %878 = vmatpush1.msra.mxu0 0.0
        %879 = vmatprep.subr.mxu0 0.0
        %880 = vmatpush1.msra.mxu0 0.0
        %881 = vmatprep.subr.mxu0 0.0
        %882 = vmatpush1.msra.mxu0 0.0
        %883 = vmatprep.subr.mxu0 0.0
        %884 = vmatpush1.msra.mxu0 0.0
        %885 = vmatprep.subr.mxu0 0.0
        %886 = vmatpush1.msra.mxu0 0.0
        %887 = vmatprep.subr.mxu0 0.0
        %888 = vmatpush1.msra.mxu0 0.0
        %889 = vmatprep.subr.mxu0 0.0
        %890 = vmatpush1.msra.mxu0 0.0
        %891 = vmatprep.subr.mxu0 0.0
        %892 = vmatpush1.msra.mxu0 0.0
        %893 = vmatprep.subr.mxu0 0.0
        %894 = vmatpush1.msra.mxu0 0.0
        %895 = vmatprep.subr.mxu0 0.0
        %896 = vmatpush1.msra.mxu0 0.0
        %897 = vmatprep.subr.mxu0 0.0
        %898 = vmatpush1.msra.mxu0 0.0
        %899 = vmatprep.subr.mxu0 0.0
        %900 = vmatpush1.msra.mxu0 0.0
        %901 = vmatprep.subr.mxu0 0.0
        %902 = vmatpush1.msra.mxu0 0.0
        %903 = vmatprep.subr.mxu0 0.0
        %904 = vmatpush1.msra.mxu0 0.0
        %905 = vmatprep.subr.mxu0 0.0
        %906 = vmatpush1.msra.mxu0 0.0
        %907 = vmatprep.subr.mxu0 0.0
        %908 = vmatpush1.msra.mxu0 0.0
        %909 = vmatprep.subr.mxu0 0.0
        %910 = vmatpush1.msra.mxu0 0.0
        %911 = vmatprep.subr.mxu0 0.0
        %912 = vmatpush1.msra.mxu0 0.0
        %913 = vmatprep.subr.mxu0 0.0
        %914 = vmatpush1.msra.mxu0 0.0
        %915 = vmatprep.subr.mxu0 0.0
        %916 = vmatpush1.msra.mxu0 0.0
        %917 = vmatprep.subr.mxu0 0.0
        %918 = vmatpush1.msra.mxu0 0.0
        %919 = vmatprep.subr.mxu0 0.0
        %920 = vmatpush1.msra.mxu0 0.0
        %921 = vmatprep.subr.mxu0 0.0
        %922 = vmatpush1.msra.mxu0 0.0
        %923 = vmatprep.subr.mxu0 0.0
        %924 = vmatpush1.msra.mxu0 0.0
        %925 = vmatprep.subr.mxu0 0.0
        %926 = vmatpush1.msra.mxu0 0.0
        %927 = vmatprep.subr.mxu0 0.0
        %928 = vmatpush1.msra.mxu0 0.0
        %929 = vmatprep.mubr.f32.mxu0 0.0
        %930 = vmatmul.mubr.f32.gmra.mrb[0].mxu0 %v863
        %v931 = vpop.f32.mrb[0].mxu0
        %v932 = vadd.f32 0.0, %v931
        %v933 = vpop.f32.mrb[0].mxu0
        %934 = vdwg.mxu0
        %v935 = vpack.c.bf16 %v932, %v932
        %v936 = vld [vmem:[%s4] sm:$0xf]
        %v937 = vld [vmem:[%s4 + $0x4] sm:$0xf]
        %v938 = vld [vmem:[%s4 + $0x8] sm:$0xf]
        %v939 = vld [vmem:[%s5] sm:$0x1]
        %v941 = vlaneseq
        %v942 = vshrl.u32 %v941, 7
        %v943 = vsub.s32 0, %v942
        %v944 = vrot.slane %v939, %v943
        %v949 = vunpack.c.l.b16 %v936
        %v950 = vunpack.c.l.b16 %v937
        %v951 = vunpack.c.l.b16 %v938
        %v952 = vpack.c.b16 %v950, %v949
        %v953 = vpack.c.b16 %v951, %v951
        %vm955 = vcmask 195584
        %v957 = vsel %vm955, %v935, 0
        %vm959 = vcmask 1043456
        %v961 = vsel %vm959, %v953, 0
        %963 = vmatprep.subr.bf16.mxu0 0
        %964 = vmatpush1.bf16.msra.mxu0 %v952
        %965 = vmatprep.subr.bf16.mxu0 0
        %966 = vmatpush1.bf16.msra.mxu0 %v961
        %967 = vmatprep.subr.bf16.mxu0 0
        %968 = vmatpush1.bf16.msra.mxu0 0
        %969 = vmatprep.subr.bf16.mxu0 0
        %970 = vmatpush1.bf16.msra.mxu0 0
        %971 = vmatprep.subr.bf16.mxu0 0
        %972 = vmatpush1.bf16.msra.mxu0 0
        %973 = vmatprep.subr.bf16.mxu0 0
        %974 = vmatpush1.bf16.msra.mxu0 0
        %975 = vmatprep.subr.bf16.mxu0 0
        %976 = vmatpush1.bf16.msra.mxu0 0
        %977 = vmatprep.subr.bf16.mxu0 0
        %978 = vmatpush1.bf16.msra.mxu0 0
        %979 = vmatprep.subr.bf16.mxu0 0
        %980 = vmatpush1.bf16.msra.mxu0 0
        %981 = vmatprep.subr.bf16.mxu0 0
        %982 = vmatpush1.bf16.msra.mxu0 0
        %983 = vmatprep.subr.bf16.mxu0 0
        %984 = vmatpush1.bf16.msra.mxu0 0
        %985 = vmatprep.subr.bf16.mxu0 0
        %986 = vmatpush1.bf16.msra.mxu0 0
        %987 = vmatprep.subr.bf16.mxu0 0
        %988 = vmatpush1.bf16.msra.mxu0 0
        %989 = vmatprep.subr.bf16.mxu0 0
        %990 = vmatpush1.bf16.msra.mxu0 0
        %991 = vmatprep.subr.bf16.mxu0 0
        %992 = vmatpush1.bf16.msra.mxu0 0
        %993 = vmatprep.subr.bf16.mxu0 0
        %994 = vmatpush1.bf16.msra.mxu0 0
        %995 = vmatprep.mubr.bf16.mxu0 0
        %996 = vmatmul.mubr.bf16.gmra.mrb[0].mxu0 %v957
        %v997 = vpop.f32.mrb[0].mxu0
        %v998 = vadd.f32 %v944, %v997
        %v999 = vpop.f32.mrb[0].mxu0
        %v1000 = vpop.f32.mrb[0].mxu0
        %v1001 = vpop.f32.mrb[0].mxu0
        %1002 = vdwg.mxu0
        %v1003 = vmax.f32 %v998, 0.0
        %v1005 = vrot.slane %v1003, 7
        %v1007 = vsel %vm625, 0.0, %v1005
        %vm1008 = vcmask 1044480
        %v1009 = vsel %vm1008, %v1007, 0.0
        %v1011 = vrot.slane %v1009, 1
        %1012 = vrot.lane.b32.xlu0 %v1011, 8
        %v1013 = vpop.permute.xlu0 %1012
        %v1015 = vrot.slane %v1009, 2
        %1016 = vrot.lane.b32.xlu0 %v1015, 16
        %v1017 = vpop.permute.xlu0 %1016
        %v1019 = vsel %vm860, %v1009, %v1013
        %v1020 = vsel %vm666, %v1019, %v1017
        %vm1021 = vcmask 31744
        %v1022 = vsel %vm1021, %v622, 0
        %v1025 = vsel %vm959, %v1020, 0
        %1027 = vmatprep.subr.mxu0 0.0
        %1028 = vmatpush1.msra.mxu0 %v1025
        %1029 = vmatprep.subr.mxu0 0.0
        %1030 = vmatpush1.msra.mxu0 0.0
        %1031 = vmatprep.subr.mxu0 0.0
        %1032 = vmatpush1.msra.mxu0 0.0
        %1033 = vmatprep.subr.mxu0 0.0
        %1034 = vmatpush1.msra.mxu0 0.0
        %1035 = vmatprep.subr.mxu0 0.0
        %1036 = vmatpush1.msra.mxu0 0.0
        %1037 = vmatprep.subr.mxu0 0.0
        %1038 = vmatpush1.msra.mxu0 0.0
        %1039 = vmatprep.subr.mxu0 0.0
        %1040 = vmatpush1.msra.mxu0 0.0
        %1041 = vmatprep.subr.mxu0 0.0
        %1042 = vmatpush1.msra.mxu0 0.0
        %1043 = vmatprep.subr.mxu0 0.0
        %1044 = vmatpush1.msra.mxu0 0.0
        %1045 = vmatprep.subr.mxu0 0.0
        %1046 = vmatpush1.msra.mxu0 0.0
        %1047 = vmatprep.subr.mxu0 0.0
        %1048 = vmatpush1.msra.mxu0 0.0
        %1049 = vmatprep.subr.mxu0 0.0
        %1050 = vmatpush1.msra.mxu0 0.0
        %1051 = vmatprep.subr.mxu0 0.0
        %1052 = vmatpush1.msra.mxu0 0.0
        %1053 = vmatprep.subr.mxu0 0.0
        %1054 = vmatpush1.msra.mxu0 0.0
        %1055 = vmatprep.subr.mxu0 0.0
        %1056 = vmatpush1.msra.mxu0 0.0
        %1057 = vmatprep.subr.mxu0 0.0
        %1058 = vmatpush1.msra.mxu0 0.0
        %1059 = vmatprep.subr.mxu0 0.0
        %1060 = vmatpush1.msra.mxu0 0.0
        %1061 = vmatprep.subr.mxu0 0.0
        %1062 = vmatpush1.msra.mxu0 0.0
        %1063 = vmatprep.subr.mxu0 0.0
        %1064 = vmatpush1.msra.mxu0 0.0
        %1065 = vmatprep.subr.mxu0 0.0
        %1066 = vmatpush1.msra.mxu0 0.0
        %1067 = vmatprep.subr.mxu0 0.0
        %1068 = vmatpush1.msra.mxu0 0.0
        %1069 = vmatprep.subr.mxu0 0.0
        %1070 = vmatpush1.msra.mxu0 0.0
        %1071 = vmatprep.subr.mxu0 0.0
        %1072 = vmatpush1.msra.mxu0 0.0
        %1073 = vmatprep.subr.mxu0 0.0
        %1074 = vmatpush1.msra.mxu0 0.0
        %1075 = vmatprep.subr.mxu0 0.0
        %1076 = vmatpush1.msra.mxu0 0.0
        %1077 = vmatprep.subr.mxu0 0.0
        %1078 = vmatpush1.msra.mxu0 0.0
        %1079 = vmatprep.subr.mxu0 0.0
        %1080 = vmatpush1.msra.mxu0 0.0
        %1081 = vmatprep.subr.mxu0 0.0
        %1082 = vmatpush1.msra.mxu0 0.0
        %1083 = vmatprep.subr.mxu0 0.0
        %1084 = vmatpush1.msra.mxu0 0.0
        %1085 = vmatprep.subr.mxu0 0.0
        %1086 = vmatpush1.msra.mxu0 0.0
        %1087 = vmatprep.subr.mxu0 0.0
        %1088 = vmatpush1.msra.mxu0 0.0
        %1089 = vmatprep.subr.mxu0 0.0
        %1090 = vmatpush1.msra.mxu0 0.0
        %1091 = vmatprep.mubr.f32.mxu0 0.0
        %1092 = vmatmul.mubr.f32.gmra.mrb[0].mxu0 %v1022
        %v1093 = vpop.f32.mrb[0].mxu0
        %v1094 = vadd.f32 0.0, %v1093
        %v1095 = vpop.f32.mrb[0].mxu0
        %1096 = vdwg.mxu0
        %v1097 = vpack.c.bf16 %v1094, %v1094
        %v1098 = vld [vmem:[%s6] sm:$0xf]
        %v1099 = vld [vmem:[%s6 + $0x4] sm:$0xf]
        %v1100 = vld [vmem:[%s6 + $0x8] sm:$0xf]
        %v1101 = vld [vmem:[%s7] sm:$0x1]
        %v1103 = vlaneseq
        %v1104 = vshrl.u32 %v1103, 7
        %v1105 = vsub.s32 0, %v1104
        %v1106 = vrot.slane %v1101, %v1105
        %v1111 = vunpack.c.l.b16 %v1098
        %v1112 = vunpack.c.l.b16 %v1099
        %v1113 = vunpack.c.l.b16 %v1100
        %v1114 = vpack.c.b16 %v1112, %v1111
        %v1115 = vpack.c.b16 %v1113, %v1113
        %v1118 = vsel %vm955, %v1097, 0
        %v1121 = vsel %vm959, %v1115, 0
        %1123 = vmatprep.subr.bf16.mxu0 0
        %1124 = vmatpush1.bf16.msra.mxu0 %v1114
        %1125 = vmatprep.subr.bf16.mxu0 0
        %1126 = vmatpush1.bf16.msra.mxu0 %v1121
        %1127 = vmatprep.subr.bf16.mxu0 0
        %1128 = vmatpush1.bf16.msra.mxu0 0
        %1129 = vmatprep.subr.bf16.mxu0 0
        %1130 = vmatpush1.bf16.msra.mxu0 0
        %1131 = vmatprep.subr.bf16.mxu0 0
        %1132 = vmatpush1.bf16.msra.mxu0 0
        %1133 = vmatprep.subr.bf16.mxu0 0
        %1134 = vmatpush1.bf16.msra.mxu0 0
        %1135 = vmatprep.subr.bf16.mxu0 0
        %1136 = vmatpush1.bf16.msra.mxu0 0
        %1137 = vmatprep.subr.bf16.mxu0 0
        %1138 = vmatpush1.bf16.msra.mxu0 0
        %1139 = vmatprep.subr.bf16.mxu0 0
        %1140 = vmatpush1.bf16.msra.mxu0 0
        %1141 = vmatprep.subr.bf16.mxu0 0
        %1142 = vmatpush1.bf16.msra.mxu0 0
        %1143 = vmatprep.subr.bf16.mxu0 0
        %1144 = vmatpush1.bf16.msra.mxu0 0
        %1145 = vmatprep.subr.bf16.mxu0 0
        %1146 = vmatpush1.bf16.msra.mxu0 0
        %1147 = vmatprep.subr.bf16.mxu0 0
        %1148 = vmatpush1.bf16.msra.mxu0 0
        %1149 = vmatprep.subr.bf16.mxu0 0
        %1150 = vmatpush1.bf16.msra.mxu0 0
        %1151 = vmatprep.subr.bf16.mxu0 0
        %1152 = vmatpush1.bf16.msra.mxu0 0
        %1153 = vmatprep.subr.bf16.mxu0 0
        %1154 = vmatpush1.bf16.msra.mxu0 0
        %1155 = vmatprep.mubr.bf16.mxu0 0
        %1156 = vmatmul.mubr.bf16.gmra.mrb[0].mxu0 %v1118
        %v1157 = vpop.f32.mrb[0].mxu0
        %v1158 = vadd.f32 %v1106, %v1157
        %v1159 = vpop.f32.mrb[0].mxu0
        %v1160 = vpop.f32.mrb[0].mxu0
        %v1161 = vpop.f32.mrb[0].mxu0
        %1162 = vdwg.mxu0
        %v1163 = vmax.f32 %v1158, 0.0
        %v1165 = vrot.slane %v1163, 7
        %v1167 = vsel %vm625, 0.0, %v1165
        %vm1168 = vcmask 1042432
        %v1169 = vsel %vm1168, %v1167, 0.0
        %v1171 = vrot.slane %v1169, 1
        %1172 = vrot.lane.b32.xlu0 %v1171, 8
        %v1173 = vpop.permute.xlu0 %1172
        %v1175 = vrot.slane %v1169, 2
        %1176 = vrot.lane.b32.xlu0 %v1175, 16
        %v1177 = vpop.permute.xlu0 %1176
        %v1179 = vsel %vm860, %v1169, %v1173
        %v1180 = vsel %vm666, %v1179, %v1177
        %vm1181 = vcmask 15360
        %v1182 = vsel %vm1181, %v622, 0
        %vm1184 = vcmask 1041408
        %v1186 = vsel %vm1184, %v1180, 0
        %1188 = vmatprep.subr.mxu0 0.0
        %1189 = vmatpush1.msra.mxu0 %v1186
        %1190 = vmatprep.subr.mxu0 0.0
        %1191 = vmatpush1.msra.mxu0 0.0
        %1192 = vmatprep.subr.mxu0 0.0
        %1193 = vmatpush1.msra.mxu0 0.0
        %1194 = vmatprep.subr.mxu0 0.0
        %1195 = vmatpush1.msra.mxu0 0.0
        %1196 = vmatprep.subr.mxu0 0.0
        %1197 = vmatpush1.msra.mxu0 0.0
        %1198 = vmatprep.subr.mxu0 0.0
        %1199 = vmatpush1.msra.mxu0 0.0
        %1200 = vmatprep.subr.mxu0 0.0
        %1201 = vmatpush1.msra.mxu0 0.0
        %1202 = vmatprep.subr.mxu0 0.0
        %1203 = vmatpush1.msra.mxu0 0.0
        %1204 = vmatprep.subr.mxu0 0.0
        %1205 = vmatpush1.msra.mxu0 0.0
        %1206 = vmatprep.subr.mxu0 0.0
        %1207 = vmatpush1.msra.mxu0 0.0
        %1208 = vmatprep.subr.mxu0 0.0
        %1209 = vmatpush1.msra.mxu0 0.0
        %1210 = vmatprep.subr.mxu0 0.0
        %1211 = vmatpush1.msra.mxu0 0.0
        %1212 = vmatprep.subr.mxu0 0.0
        %1213 = vmatpush1.msra.mxu0 0.0
        %1214 = vmatprep.subr.mxu0 0.0
        %1215 = vmatpush1.msra.mxu0 0.0
        %1216 = vmatprep.subr.mxu0 0.0
        %1217 = vmatpush1.msra.mxu0 0.0
        %1218 = vmatprep.subr.mxu0 0.0
        %1219 = vmatpush1.msra.mxu0 0.0
        %1220 = vmatprep.subr.mxu0 0.0
        %1221 = vmatpush1.msra.mxu0 0.0
        %1222 = vmatprep.subr.mxu0 0.0
        %1223 = vmatpush1.msra.mxu0 0.0
        %1224 = vmatprep.subr.mxu0 0.0
        %1225 = vmatpush1.msra.mxu0 0.0
        %1226 = vmatprep.subr.mxu0 0.0
        %1227 = vmatpush1.msra.mxu0 0.0
        %1228 = vmatprep.subr.mxu0 0.0
        %1229 = vmatpush1.msra.mxu0 0.0
        %1230 = vmatprep.subr.mxu0 0.0
        %1231 = vmatpush1.msra.mxu0 0.0
        %1232 = vmatprep.subr.mxu0 0.0
        %1233 = vmatpush1.msra.mxu0 0.0
        %1234 = vmatprep.subr.mxu0 0.0
        %1235 = vmatpush1.msra.mxu0 0.0
        %1236 = vmatprep.subr.mxu0 0.0
        %1237 = vmatpush1.msra.mxu0 0.0
        %1238 = vmatprep.subr.mxu0 0.0
        %1239 = vmatpush1.msra.mxu0 0.0
        %1240 = vmatprep.subr.mxu0 0.0
        %1241 = vmatpush1.msra.mxu0 0.0
        %1242 = vmatprep.subr.mxu0 0.0
        %1243 = vmatpush1.msra.mxu0 0.0
        %1244 = vmatprep.subr.mxu0 0.0
        %1245 = vmatpush1.msra.mxu0 0.0
        %1246 = vmatprep.subr.mxu0 0.0
        %1247 = vmatpush1.msra.mxu0 0.0
        %1248 = vmatprep.subr.mxu0 0.0
        %1249 = vmatpush1.msra.mxu0 0.0
        %1250 = vmatprep.subr.mxu0 0.0
        %1251 = vmatpush1.msra.mxu0 0.0
        %1252 = vmatprep.mubr.f32.mxu0 0.0
        %1253 = vmatmul.mubr.f32.gmra.mrb[0].mxu0 %v1182
        %v1254 = vpop.f32.mrb[0].mxu0
        %v1255 = vadd.f32 0.0, %v1254
        %v1256 = vpop.f32.mrb[0].mxu0
        %1257 = vdwg.mxu0
        %v1258 = vpack.c.bf16 %v1255, %v1255
        %v1259 = vld [vmem:[%s8] sm:$0xf]
        %v1260 = vld [vmem:[%s8 + $0x4] sm:$0xf]
        %v1261 = vld [vmem:[%s8 + $0x8] sm:$0xf]
        %v1262 = vld [vmem:[%s9] sm:$0x1]
        %v1266 = vunpack.c.l.b16 %v1259
        %v1267 = vunpack.c.l.b16 %v1260
        %v1268 = vunpack.c.l.b16 %v1261
        %v1269 = vpack.c.b16 %v1267, %v1266
        %v1270 = vpack.c.b16 %v1268, %v1268
        %v1273 = vsel %vm955, %v1258, 0
        %v1276 = vsel %vm959, %v1270, 0
        %1278 = vmatprep.subr.bf16.mxu0 0
        %1279 = vmatpush1.bf16.msra.mxu0 %v1269
        %1280 = vmatprep.subr.bf16.mxu0 0
        %1281 = vmatpush1.bf16.msra.mxu0 %v1276
        %1282 = vmatprep.subr.bf16.mxu0 0
        %1283 = vmatpush1.bf16.msra.mxu0 0
        %1284 = vmatprep.subr.bf16.mxu0 0
        %1285 = vmatpush1.bf16.msra.mxu0 0
        %1286 = vmatprep.subr.bf16.mxu0 0
        %1287 = vmatpush1.bf16.msra.mxu0 0
        %1288 = vmatprep.subr.bf16.mxu0 0
        %1289 = vmatpush1.bf16.msra.mxu0 0
        %1290 = vmatprep.subr.bf16.mxu0 0
        %1291 = vmatpush1.bf16.msra.mxu0 0
        %1292 = vmatprep.subr.bf16.mxu0 0
        %1293 = vmatpush1.bf16.msra.mxu0 0
        %1294 = vmatprep.subr.bf16.mxu0 0
        %1295 = vmatpush1.bf16.msra.mxu0 0
        %1296 = vmatprep.subr.bf16.mxu0 0
        %1297 = vmatpush1.bf16.msra.mxu0 0
        %1298 = vmatprep.subr.bf16.mxu0 0
        %1299 = vmatpush1.bf16.msra.mxu0 0
        %1300 = vmatprep.subr.bf16.mxu0 0
        %1301 = vmatpush1.bf16.msra.mxu0 0
        %1302 = vmatprep.subr.bf16.mxu0 0
        %1303 = vmatpush1.bf16.msra.mxu0 0
        %1304 = vmatprep.subr.bf16.mxu0 0
        %1305 = vmatpush1.bf16.msra.mxu0 0
        %1306 = vmatprep.subr.bf16.mxu0 0
        %1307 = vmatpush1.bf16.msra.mxu0 0
        %1308 = vmatprep.subr.bf16.mxu0 0
        %1309 = vmatpush1.bf16.msra.mxu0 0
        %1310 = vmatprep.mubr.bf16.mxu0 0
        %1311 = vmatmul.mubr.bf16.gmra.mrb[0].mxu0 %v1273
        %v1312 = vpop.f32.mrb[0].mxu0
        %v1313 = vadd.f32 %v1262, %v1312
        %v1314 = vpop.f32.mrb[0].mxu0
        %v1315 = vpop.f32.mrb[0].mxu0
        %v1316 = vpop.f32.mrb[0].mxu0
        %1317 = vdwg.mxu0
        %v1318 = vmax.f32 %v1313, 0.0
        %v1320 = vrot.slane %v1318, 7
        %v1322 = vsel %vm625, %v1318, %v1320
        %v1324 = vrot.slane %v1322, 7
        %v1326 = vsel %vm625, 0.0, %v1324
        %v1327 = vsel %vm1168, %v1326, 0.0
        %v1329 = vrot.slane %v1327, 1
        %1330 = vrot.lane.b32.xlu0 %v1329, 8
        %v1331 = vpop.permute.xlu0 %1330
        %v1333 = vrot.slane %v1327, 2
        %1334 = vrot.lane.b32.xlu0 %v1333, 16
        %v1335 = vpop.permute.xlu0 %1334
        %v1337 = vsel %vm860, %v1327, %v1331
        %v1338 = vsel %vm666, %v1337, %v1335
        %v1339 = vpack.c.bf16 %v1338, %v1338
        %v1340 = vld [vmem:[%s10] sm:$0xf]
        %v1341 = vld [vmem:[%s10 + $0x4] sm:$0xf]
        %v1342 = vld [vmem:[%s10 + $0x8] sm:$0xf]
        %v1343 = vld [vmem:[%s11] sm:$0x1]
        %v1345 = vlaneseq
        %v1346 = vshrl.u32 %v1345, 7
        %v1347 = vsub.s32 0, %v1346
        %v1348 = vrot.slane %v1343, %v1347
        %v1353 = vunpack.c.l.b16 %v1340
        %v1354 = vunpack.c.l.b16 %v1341
        %v1355 = vunpack.c.l.b16 %v1342
        %v1356 = vpack.c.b16 %v1354, %v1353
        %v1357 = vpack.c.b16 %v1355, %v1355
        %v1360 = vsel %vm955, %v1339, 0
        %v1363 = vsel %vm959, %v1357, 0
        %1365 = vmatprep.subr.bf16.mxu0 0
        %1366 = vmatpush1.bf16.msra.mxu0 %v1356
        %1367 = vmatprep.subr.bf16.mxu0 0
        %1368 = vmatpush1.bf16.msra.mxu0 %v1363
        %1369 = vmatprep.subr.bf16.mxu0 0
        %1370 = vmatpush1.bf16.msra.mxu0 0
        %1371 = vmatprep.subr.bf16.mxu0 0
        %1372 = vmatpush1.bf16.msra.mxu0 0
        %1373 = vmatprep.subr.bf16.mxu0 0
        %1374 = vmatpush1.bf16.msra.mxu0 0
        %1375 = vmatprep.subr.bf16.mxu0 0
        %1376 = vmatpush1.bf16.msra.mxu0 0
        %1377 = vmatprep.subr.bf16.mxu0 0
        %1378 = vmatpush1.bf16.msra.mxu0 0
        %1379 = vmatprep.subr.bf16.mxu0 0
        %1380 = vmatpush1.bf16.msra.mxu0 0
        %1381 = vmatprep.subr.bf16.mxu0 0
        %1382 = vmatpush1.bf16.msra.mxu0 0
        %1383 = vmatprep.subr.bf16.mxu0 0
        %1384 = vmatpush1.bf16.msra.mxu0 0
        %1385 = vmatprep.subr.bf16.mxu0 0
        %1386 = vmatpush1.bf16.msra.mxu0 0
        %1387 = vmatprep.subr.bf16.mxu0 0
        %1388 = vmatpush1.bf16.msra.mxu0 0
        %1389 = vmatprep.subr.bf16.mxu0 0
        %1390 = vmatpush1.bf16.msra.mxu0 0
        %1391 = vmatprep.subr.bf16.mxu0 0
        %1392 = vmatpush1.bf16.msra.mxu0 0
        %1393 = vmatprep.subr.bf16.mxu0 0
        %1394 = vmatpush1.bf16.msra.mxu0 0
        %1395 = vmatprep.subr.bf16.mxu0 0
        %1396 = vmatpush1.bf16.msra.mxu0 0
        %1397 = vmatprep.mubr.bf16.mxu0 0
        %1398 = vmatmul.mubr.bf16.gmra.mrb[0].mxu0 %v1360
        %v1399 = vpop.f32.mrb[0].mxu0
        %v1400 = vadd.f32 %v1348, %v1399
        %v1401 = vpop.f32.mrb[0].mxu0
        %v1402 = vpop.f32.mrb[0].mxu0
        %v1403 = vpop.f32.mrb[0].mxu0
        %1404 = vdwg.mxu0
        %v1405 = vmax.f32 %v1400, 0.0
        %v1406 = vadd.f32 %v1405, %v1163
        %v1407 = vmul.u32 %v618, 2
        %vm1408 = vcmp.eq.s32.totalorder %v616, %v1407
        %v1409 = vadd.s32 %v1407, 1
        %vm1410 = vcmp.eq.s32.totalorder %v616, %v1409
        %vm1411 = vmor %vm1408, %vm1410
        %v1412 = vsel %vm1411, 1, 0
        %v1413 = vcvt.s32.f32 %v1412
        %v1415 = vsel %vm1181, %v1413, 0
        %v1418 = vsel %vm1184, %v1406, 0
        %1420 = vmatprep.subr.mxu0 0.0
        %1421 = vmatpush1.msra.mxu0 %v1418
        %1422 = vmatprep.subr.mxu0 0.0
        %1423 = vmatpush1.msra.mxu0 0.0
        %1424 = vmatprep.subr.mxu0 0.0
        %1425 = vmatpush1.msra.mxu0 0.0
        %1426 = vmatprep.subr.mxu0 0.0
        %1427 = vmatpush1.msra.mxu0 0.0
        %1428 = vmatprep.subr.mxu0 0.0
        %1429 = vmatpush1.msra.mxu0 0.0
        %1430 = vmatprep.subr.mxu0 0.0
        %1431 = vmatpush1.msra.mxu0 0.0
        %1432 = vmatprep.subr.mxu0 0.0
        %1433 = vmatpush1.msra.mxu0 0.0
        %1434 = vmatprep.subr.mxu0 0.0
        %1435 = vmatpush1.msra.mxu0 0.0
        %1436 = vmatprep.subr.mxu0 0.0
        %1437 = vmatpush1.msra.mxu0 0.0
        %1438 = vmatprep.subr.mxu0 0.0
        %1439 = vmatpush1.msra.mxu0 0.0
        %1440 = vmatprep.subr.mxu0 0.0
        %1441 = vmatpush1.msra.mxu0 0.0
        %1442 = vmatprep.subr.mxu0 0.0
        %1443 = vmatpush1.msra.mxu0 0.0
        %1444 = vmatprep.subr.mxu0 0.0
        %1445 = vmatpush1.msra.mxu0 0.0
        %1446 = vmatprep.subr.mxu0 0.0
        %1447 = vmatpush1.msra.mxu0 0.0
        %1448 = vmatprep.subr.mxu0 0.0
        %1449 = vmatpush1.msra.mxu0 0.0
        %1450 = vmatprep.subr.mxu0 0.0
        %1451 = vmatpush1.msra.mxu0 0.0
        %1452 = vmatprep.subr.mxu0 0.0
        %1453 = vmatpush1.msra.mxu0 0.0
        %1454 = vmatprep.subr.mxu0 0.0
        %1455 = vmatpush1.msra.mxu0 0.0
        %1456 = vmatprep.subr.mxu0 0.0
        %1457 = vmatpush1.msra.mxu0 0.0
        %1458 = vmatprep.subr.mxu0 0.0
        %1459 = vmatpush1.msra.mxu0 0.0
        %1460 = vmatprep.subr.mxu0 0.0
        %1461 = vmatpush1.msra.mxu0 0.0
        %1462 = vmatprep.subr.mxu0 0.0
        %1463 = vmatpush1.msra.mxu0 0.0
        %1464 = vmatprep.subr.mxu0 0.0
        %1465 = vmatpush1.msra.mxu0 0.0
        %1466 = vmatprep.subr.mxu0 0.0
        %1467 = vmatpush1.msra.mxu0 0.0
        %1468 = vmatprep.subr.mxu0 0.0
        %1469 = vmatpush1.msra.mxu0 0.0
        %1470 = vmatprep.subr.mxu0 0.0
        %1471 = vmatpush1.msra.mxu0 0.0
        %1472 = vmatprep.subr.mxu0 0.0
        %1473 = vmatpush1.msra.mxu0 0.0
        %1474 = vmatprep.subr.mxu0 0.0
        %1475 = vmatpush1.msra.mxu0 0.0
        %1476 = vmatprep.subr.mxu0 0.0
        %1477 = vmatpush1.msra.mxu0 0.0
        %1478 = vmatprep.subr.mxu0 0.0
        %1479 = vmatpush1.msra.mxu0 0.0
        %1480 = vmatprep.subr.mxu0 0.0
        %1481 = vmatpush1.msra.mxu0 0.0
        %1482 = vmatprep.subr.mxu0 0.0
        %1483 = vmatpush1.msra.mxu0 0.0
        %1484 = vmatprep.mubr.f32.mxu0 0.0
        %1485 = vmatmul.mubr.f32.gmra.mrb[0].mxu0 %v1415
        %v1486 = vpop.f32.mrb[0].mxu0
        %v1487 = vadd.f32 0.0, %v1486
        %v1488 = vpop.f32.mrb[0].mxu0
        %1489 = vdwg.mxu0
        %v1491 = vrot.slane %v1487, 7
        %v1493 = vsel %vm625, 0.0, %v1491
        %v1494 = vsel %vm1008, %v1493, 0.0
        %v1496 = vrot.slane %v1494, 1
        %1497 = vrot.lane.b32.xlu0 %v1496, 8
        %v1498 = vpop.permute.xlu0 %1497
        %v1500 = vrot.slane %v1494, 2
        %1501 = vrot.lane.b32.xlu0 %v1500, 16
        %v1502 = vpop.permute.xlu0 %1501
        %v1504 = vsel %vm860, %v1494, %v1498
        %v1505 = vsel %vm666, %v1504, %v1502
        %v1506 = vpack.c.bf16 %v1505, %v1505
        %v1507 = vld [vmem:[%s12] sm:$0xf]
        %v1508 = vld [vmem:[%s12 + $0x4] sm:$0xf]
        %v1509 = vld [vmem:[%s12 + $0x8] sm:$0xf]
        %v1510 = vld [vmem:[%s13] sm:$0x1]
        %v1512 = vlaneseq
        %v1513 = vshrl.u32 %v1512, 7
        %v1514 = vsub.s32 0, %v1513
        %v1515 = vrot.slane %v1510, %v1514
        %v1520 = vunpack.c.l.b16 %v1507
        %v1521 = vunpack.c.l.b16 %v1508
        %v1522 = vunpack.c.l.b16 %v1509
        %v1523 = vpack.c.b16 %v1521, %v1520
        %v1524 = vpack.c.b16 %v1522, %v1522
        %v1527 = vsel %vm955, %v1506, 0
        %v1530 = vsel %vm959, %v1524, 0
        %1532 = vmatprep.subr.bf16.mxu0 0
        %1533 = vmatpush1.bf16.msra.mxu0 %v1523
        %1534 = vmatprep.subr.bf16.mxu0 0
        %1535 = vmatpush1.bf16.msra.mxu0 %v1530
        %1536 = vmatprep.subr.bf16.mxu0 0
        %1537 = vmatpush1.bf16.msra.mxu0 0
        %1538 = vmatprep.subr.bf16.mxu0 0
        %1539 = vmatpush1.bf16.msra.mxu0 0
        %1540 = vmatprep.subr.bf16.mxu0 0
        %1541 = vmatpush1.bf16.msra.mxu0 0
        %1542 = vmatprep.subr.bf16.mxu0 0
        %1543 = vmatpush1.bf16.msra.mxu0 0
        %1544 = vmatprep.subr.bf16.mxu0 0
        %1545 = vmatpush1.bf16.msra.mxu0 0
        %1546 = vmatprep.subr.bf16.mxu0 0
        %1547 = vmatpush1.bf16.msra.mxu0 0
        %1548 = vmatprep.subr.bf16.mxu0 0
        %1549 = vmatpush1.bf16.msra.mxu0 0
        %1550 = vmatprep.subr.bf16.mxu0 0
        %1551 = vmatpush1.bf16.msra.mxu0 0
        %1552 = vmatprep.subr.bf16.mxu0 0
        %1553 = vmatpush1.bf16.msra.mxu0 0
        %1554 = vmatprep.subr.bf16.mxu0 0
        %1555 = vmatpush1.bf16.msra.mxu0 0
        %1556 = vmatprep.subr.bf16.mxu0 0
        %1557 = vmatpush1.bf16.msra.mxu0 0
        %1558 = vmatprep.subr.bf16.mxu0 0
        %1559 = vmatpush1.bf16.msra.mxu0 0
        %1560 = vmatprep.subr.bf16.mxu0 0
        %1561 = vmatpush1.bf16.msra.mxu0 0
        %1562 = vmatprep.subr.bf16.mxu0 0
        %1563 = vmatpush1.bf16.msra.mxu0 0
        %1564 = vmatprep.mubr.bf16.mxu0 0
        %1565 = vmatmul.mubr.bf16.gmra.mrb[0].mxu0 %v1527
        %v1566 = vpop.f32.mrb[0].mxu0
        %v1567 = vadd.f32 %v1515, %v1566
        %v1568 = vpop.f32.mrb[0].mxu0
        %v1569 = vpop.f32.mrb[0].mxu0
        %v1570 = vpop.f32.mrb[0].mxu0
        %1571 = vdwg.mxu0
        %v1572 = vmax.f32 %v1567, 0.0
        %v1573 = vadd.f32 %v1572, %v1003
        %v1574 = vsel %vm1021, %v1413, 0
        %v1577 = vsel %vm959, %v1573, 0
        %1579 = vmatprep.subr.mxu0 0.0
        %1580 = vmatpush1.msra.mxu0 %v1577
        %1581 = vmatprep.subr.mxu0 0.0
        %1582 = vmatpush1.msra.mxu0 0.0
        %1583 = vmatprep.subr.mxu0 0.0
        %1584 = vmatpush1.msra.mxu0 0.0
        %1585 = vmatprep.subr.mxu0 0.0
        %1586 = vmatpush1.msra.mxu0 0.0
        %1587 = vmatprep.subr.mxu0 0.0
        %1588 = vmatpush1.msra.mxu0 0.0
        %1589 = vmatprep.subr.mxu0 0.0
        %1590 = vmatpush1.msra.mxu0 0.0
        %1591 = vmatprep.subr.mxu0 0.0
        %1592 = vmatpush1.msra.mxu0 0.0
        %1593 = vmatprep.subr.mxu0 0.0
        %1594 = vmatpush1.msra.mxu0 0.0
        %1595 = vmatprep.subr.mxu0 0.0
        %1596 = vmatpush1.msra.mxu0 0.0
        %1597 = vmatprep.subr.mxu0 0.0
        %1598 = vmatpush1.msra.mxu0 0.0
        %1599 = vmatprep.subr.mxu0 0.0
        %1600 = vmatpush1.msra.mxu0 0.0
        %1601 = vmatprep.subr.mxu0 0.0
        %1602 = vmatpush1.msra.mxu0 0.0
        %1603 = vmatprep.subr.mxu0 0.0
        %1604 = vmatpush1.msra.mxu0 0.0
        %1605 = vmatprep.subr.mxu0 0.0
        %1606 = vmatpush1.msra.mxu0 0.0
        %1607 = vmatprep.subr.mxu0 0.0
        %1608 = vmatpush1.msra.mxu0 0.0
        %1609 = vmatprep.subr.mxu0 0.0
        %1610 = vmatpush1.msra.mxu0 0.0
        %1611 = vmatprep.subr.mxu0 0.0
        %1612 = vmatpush1.msra.mxu0 0.0
        %1613 = vmatprep.subr.mxu0 0.0
        %1614 = vmatpush1.msra.mxu0 0.0
        %1615 = vmatprep.subr.mxu0 0.0
        %1616 = vmatpush1.msra.mxu0 0.0
        %1617 = vmatprep.subr.mxu0 0.0
        %1618 = vmatpush1.msra.mxu0 0.0
        %1619 = vmatprep.subr.mxu0 0.0
        %1620 = vmatpush1.msra.mxu0 0.0
        %1621 = vmatprep.subr.mxu0 0.0
        %1622 = vmatpush1.msra.mxu0 0.0
        %1623 = vmatprep.subr.mxu0 0.0
        %1624 = vmatpush1.msra.mxu0 0.0
        %1625 = vmatprep.subr.mxu0 0.0
        %1626 = vmatpush1.msra.mxu0 0.0
        %1627 = vmatprep.subr.mxu0 0.0
        %1628 = vmatpush1.msra.mxu0 0.0
        %1629 = vmatprep.subr.mxu0 0.0
        %1630 = vmatpush1.msra.mxu0 0.0
        %1631 = vmatprep.subr.mxu0 0.0
        %1632 = vmatpush1.msra.mxu0 0.0
        %1633 = vmatprep.subr.mxu0 0.0
        %1634 = vmatpush1.msra.mxu0 0.0
        %1635 = vmatprep.subr.mxu0 0.0
        %1636 = vmatpush1.msra.mxu0 0.0
        %1637 = vmatprep.subr.mxu0 0.0
        %1638 = vmatpush1.msra.mxu0 0.0
        %1639 = vmatprep.subr.mxu0 0.0
        %1640 = vmatpush1.msra.mxu0 0.0
        %1641 = vmatprep.subr.mxu0 0.0
        %1642 = vmatpush1.msra.mxu0 0.0
        %1643 = vmatprep.mubr.f32.mxu0 0.0
        %1644 = vmatmul.mubr.f32.gmra.mrb[0].mxu0 %v1574
        %v1645 = vpop.f32.mrb[0].mxu0
        %v1646 = vadd.f32 0.0, %v1645
        %v1647 = vpop.f32.mrb[0].mxu0
        %1648 = vdwg.mxu0
        %v1650 = vrot.slane %v1646, 7
        %v1652 = vsel %vm625, 0.0, %v1650
        %v1653 = vsel %vm625, %v1650, 0.0
        %v1656 = vrot.slane %v1652, 1
        %v1657 = vrot.slane %v1653, 1
        %v1658 = vsel %vm636, %v1656, %v1657
        %1659 = vrot.lane.b32.xlu0 %v1658, 8
        %v1660 = vpop.permute.xlu0 %1659
        %v1662 = vrot.slane %v1652, 2
        %v1663 = vrot.slane %v1653, 2
        %v1664 = vsel %vm648, %v1662, %v1663
        %1665 = vrot.lane.b32.xlu0 %v1664, 16
        %v1666 = vpop.permute.xlu0 %1665
        %v1668 = vsel %vm860, %v1652, %v1660
        %v1669 = vsel %vm666, %v1668, %v1666
        %v1670 = vpack.c.bf16 %v1669, %v1669
        %v1671 = vld [vmem:[%s14] sm:$0xf]
        %v1672 = vld [vmem:[%s14 + $0x4] sm:$0xf]
        %v1673 = vld [vmem:[%s14 + $0x8] sm:$0xf]
        %v1674 = vld [vmem:[%s15] sm:$0x1]
        %v1676 = vlaneseq
        %v1677 = vshrl.u32 %v1676, 7
        %v1678 = vsub.s32 0, %v1677
        %v1679 = vrot.slane %v1674, %v1678
        %v1684 = vunpack.c.l.b16 %v1671
        %v1685 = vunpack.c.l.b16 %v1672
        %v1686 = vunpack.c.l.b16 %v1673
        %v1687 = vpack.c.b16 %v1685, %v1684
        %v1688 = vpack.c.b16 %v1686, %v1686
        %v1691 = vsel %vm955, %v1670, 0
        %v1694 = vsel %vm959, %v1688, 0
        %1696 = vmatprep.subr.bf16.mxu0 0
        %1697 = vmatpush1.bf16.msra.mxu0 %v1687
        %1698 = vmatprep.subr.bf16.mxu0 0
        %1699 = vmatpush1.bf16.msra.mxu0 %v1694
        %1700 = vmatprep.subr.bf16.mxu0 0
        %1701 = vmatpush1.bf16.msra.mxu0 0
        %1702 = vmatprep.subr.bf16.mxu0 0
        %1703 = vmatpush1.bf16.msra.mxu0 0
        %1704 = vmatprep.subr.bf16.mxu0 0
        %1705 = vmatpush1.bf16.msra.mxu0 0
        %1706 = vmatprep.subr.bf16.mxu0 0
        %1707 = vmatpush1.bf16.msra.mxu0 0
        %1708 = vmatprep.subr.bf16.mxu0 0
        %1709 = vmatpush1.bf16.msra.mxu0 0
        %1710 = vmatprep.subr.bf16.mxu0 0
        %1711 = vmatpush1.bf16.msra.mxu0 0
        %1712 = vmatprep.subr.bf16.mxu0 0
        %1713 = vmatpush1.bf16.msra.mxu0 0
        %1714 = vmatprep.subr.bf16.mxu0 0
        %1715 = vmatpush1.bf16.msra.mxu0 0
        %1716 = vmatprep.subr.bf16.mxu0 0
        %1717 = vmatpush1.bf16.msra.mxu0 0
        %1718 = vmatprep.subr.bf16.mxu0 0
        %1719 = vmatpush1.bf16.msra.mxu0 0
        %1720 = vmatprep.subr.bf16.mxu0 0
        %1721 = vmatpush1.bf16.msra.mxu0 0
        %1722 = vmatprep.subr.bf16.mxu0 0
        %1723 = vmatpush1.bf16.msra.mxu0 0
        %1724 = vmatprep.subr.bf16.mxu0 0
        %1725 = vmatpush1.bf16.msra.mxu0 0
        %1726 = vmatprep.subr.bf16.mxu0 0
        %1727 = vmatpush1.bf16.msra.mxu0 0
        %1728 = vmatprep.mubr.bf16.mxu0 0
        %1729 = vmatmul.mubr.bf16.gmra.mrb[0].mxu0 %v1691
        %v1730 = vpop.f32.mrb[0].mxu0
        %v1731 = vadd.f32 %v1679, %v1730
        %v1732 = vpop.f32.mrb[0].mxu0
        %v1733 = vpop.f32.mrb[0].mxu0
        %v1734 = vpop.f32.mrb[0].mxu0
        %1735 = vdwg.mxu0
        %v1736 = vmax.f32 %v1731, 0.0
        %v1737 = vadd.f32 %v1736, %v840
        %v1738 = vadd.s32 %v616, 8
        %v1739 = vmul.u32 %v616, 8
        %v1740 = vmul.u32 %v1738, 8
        %v1741 = vmul.u32 %v618, 16
        %vm1742 = vcmp.le.s32.totalorder %v1741, %v1739
        %vm1743 = vcmp.le.s32.totalorder %v1741, %v1740
        %v1744 = vadd.s32 %v618, 1
        %v1745 = vmul.u32 %v1744, 16
        %vm1746 = vcmp.lt.s32.totalorder %v1739, %v1745
        %vm1747 = vcmp.lt.s32.totalorder %v1740, %v1745
        %vm1748 = vmand %vm1742, %vm1746
        %vm1749 = vmand %vm1743, %vm1747
        %v1750 = vsel %vm1748, 1, 0
        %v1751 = vsel %vm1749, 1, 0
        %v1752 = vcvt.s32.f32 %v1750
        %v1753 = vcvt.s32.f32 %v1751
        %v1755 = vsel %vm860, %v1752, 0
        %v1758 = vsel %vm860, %v1753, 0
        %1760 = vmatprep.subr.mxu0 0.0
        %1761 = vmatpush1.msra.mxu0 %v1737
        %1762 = vmatprep.subr.mxu0 0.0
        %1763 = vmatpush1.msra.mxu0 0.0
        %1764 = vmatprep.subr.mxu0 0.0
        %1765 = vmatpush1.msra.mxu0 0.0
        %1766 = vmatprep.subr.mxu0 0.0
        %1767 = vmatpush1.msra.mxu0 0.0
        %1768 = vmatprep.subr.mxu0 0.0
        %1769 = vmatpush1.msra.mxu0 0.0
        %1770 = vmatprep.subr.mxu0 0.0
        %1771 = vmatpush1.msra.mxu0 0.0
        %1772 = vmatprep.subr.mxu0 0.0
        %1773 = vmatpush1.msra.mxu0 0.0
        %1774 = vmatprep.subr.mxu0 0.0
        %1775 = vmatpush1.msra.mxu0 0.0
        %1776 = vmatprep.subr.mxu0 0.0
        %1777 = vmatpush1.msra.mxu0 0.0
        %1778 = vmatprep.subr.mxu0 0.0
        %1779 = vmatpush1.msra.mxu0 0.0
        %1780 = vmatprep.subr.mxu0 0.0
        %1781 = vmatpush1.msra.mxu0 0.0
        %1782 = vmatprep.subr.mxu0 0.0
        %1783 = vmatpush1.msra.mxu0 0.0
        %1784 = vmatprep.subr.mxu0 0.0
        %1785 = vmatpush1.msra.mxu0 0.0
        %1786 = vmatprep.subr.mxu0 0.0
        %1787 = vmatpush1.msra.mxu0 0.0
        %1788 = vmatprep.subr.mxu0 0.0
        %1789 = vmatpush1.msra.mxu0 0.0
        %1790 = vmatprep.subr.mxu0 0.0
        %1791 = vmatpush1.msra.mxu0 0.0
        %1792 = vmatprep.subr.mxu0 0.0
        %1793 = vmatpush1.msra.mxu0 0.0
        %1794 = vmatprep.subr.mxu0 0.0
        %1795 = vmatpush1.msra.mxu0 0.0
        %1796 = vmatprep.subr.mxu0 0.0
        %1797 = vmatpush1.msra.mxu0 0.0
        %1798 = vmatprep.subr.mxu0 0.0
        %1799 = vmatpush1.msra.mxu0 0.0
        %1800 = vmatprep.subr.mxu0 0.0
        %1801 = vmatpush1.msra.mxu0 0.0
        %1802 = vmatprep.subr.mxu0 0.0
        %1803 = vmatpush1.msra.mxu0 0.0
        %1804 = vmatprep.subr.mxu0 0.0
        %1805 = vmatpush1.msra.mxu0 0.0
        %1806 = vmatprep.subr.mxu0 0.0
        %1807 = vmatpush1.msra.mxu0 0.0
        %1808 = vmatprep.subr.mxu0 0.0
        %1809 = vmatpush1.msra.mxu0 0.0
        %1810 = vmatprep.subr.mxu0 0.0
        %1811 = vmatpush1.msra.mxu0 0.0
        %1812 = vmatprep.subr.mxu0 0.0
        %1813 = vmatpush1.msra.mxu0 0.0
        %1814 = vmatprep.subr.mxu0 0.0
        %1815 = vmatpush1.msra.mxu0 0.0
        %1816 = vmatprep.subr.mxu0 0.0
        %1817 = vmatpush1.msra.mxu0 0.0
        %1818 = vmatprep.subr.mxu0 0.0
        %1819 = vmatpush1.msra.mxu0 0.0
        %1820 = vmatprep.subr.mxu0 0.0
        %1821 = vmatpush1.msra.mxu0 0.0
        %1822 = vmatprep.subr.mxu0 0.0
        %1823 = vmatpush1.msra.mxu0 0.0
        %1824 = vmatprep.mubr.f32.mxu0 0.0
        %1825 = vmatmul.mubr.f32.gmra.mrb[0].mxu0 %v1755
        %v1826 = vpop.f32.mrb[0].mxu0
        %v1827 = vadd.f32 0.0, %v1826
        %v1828 = vpop.f32.mrb[0].mxu0
        %1829 = vmatprep.mubr.f32.mxu0 0.0
        %1830 = vmatmul.mubr.f32.gmra.mrb[0].mxu0 %v1758
        %v1831 = vpop.f32.mrb[0].mxu0
        %v1832 = vadd.f32 0.0, %v1831
        %v1833 = vpop.f32.mrb[0].mxu0
        %1834 = vdwg.mxu0
        %v1837 = vrot.slane %v1827, 7
        %v1838 = vrot.slane %v1832, 7
        %v1839 = vsel %vm625, %v1837, %v1838
        %v1843 = vsel %vm625, 0.0, %v1837
        %v1844 = vsel %vm625, %v1838, 0.0
        %v1847 = vrot.slane %v1843, 1
        %v1848 = vrot.slane %v1839, 1
        %v1849 = vsel %vm636, %v1847, %v1848
        %v1850 = vrot.slane %v1844, 1
        %v1851 = vsel %vm636, %v1848, %v1850
        %1852 = vrot.lane.b32.xlu0 %v1849, 8
        %v1853 = vpop.permute.xlu0 %1852
        %1854 = vrot.lane.b32.xlu0 %v1851, 8
        %v1855 = vpop.permute.xlu0 %1854
        %v1858 = vrot.slane %v1843, 2
        %v1859 = vrot.slane %v1839, 2
        %v1860 = vsel %vm648, %v1858, %v1859
        %v1861 = vrot.slane %v1844, 2
        %v1862 = vsel %vm648, %v1859, %v1861
        %1863 = vrot.lane.b32.xlu0 %v1860, 16
        %v1864 = vpop.permute.xlu0 %1863
        %1865 = vrot.lane.b32.xlu0 %v1862, 16
        %v1866 = vpop.permute.xlu0 %1865
        %v1869 = vsel %vm860, %v1843, %v1853
        %v1870 = vsel %vm860, %v1839, %v1855
        %v1871 = vsel %vm666, %v1869, %v1864
        %v1872 = vsel %vm666, %v1870, %v1866
        %v1873 = vpack.c.bf16 %v1872, %v1871
        %v1874 = vld [vmem:[%s16] sm:$0xf]
        %v1875 = vld [vmem:[%s16 + $0x4] sm:$0xf]
        %v1876 = vld [vmem:[%s16 + $0x8] sm:$0xf]
        %v1877 = vld [vmem:[%s17] sm:$0x1]
        %v1879 = vlaneseq
        %v1880 = vshrl.u32 %v1879, 7
        %v1881 = vsub.s32 0, %v1880
        %v1882 = vrot.slane %v1877, %v1881
        %v1887 = vunpack.c.l.b16 %v1874
        %v1888 = vunpack.c.l.b16 %v1875
        %v1889 = vunpack.c.l.b16 %v1876
        %v1890 = vpack.c.b16 %v1888, %v1887
        %v1891 = vpack.c.b16 %v1889, %v1889
        %v1894 = vsel %vm955, %v1873, 0
        %v1897 = vsel %vm959, %v1891, 0
        %1899 = vmatprep.subr.bf16.mxu0 0
        %1900 = vmatpush1.bf16.msra.mxu0 %v1890
        %1901 = vmatprep.subr.bf16.mxu0 0
        %1902 = vmatpush1.bf16.msra.mxu0 %v1897
        %1903 = vmatprep.subr.bf16.mxu0 0
        %1904 = vmatpush1.bf16.msra.mxu0 0
        %1905 = vmatprep.subr.bf16.mxu0 0
        %1906 = vmatpush1.bf16.msra.mxu0 0
        %1907 = vmatprep.subr.bf16.mxu0 0
        %1908 = vmatpush1.bf16.msra.mxu0 0
        %1909 = vmatprep.subr.bf16.mxu0 0
        %1910 = vmatpush1.bf16.msra.mxu0 0
        %1911 = vmatprep.subr.bf16.mxu0 0
        %1912 = vmatpush1.bf16.msra.mxu0 0
        %1913 = vmatprep.subr.bf16.mxu0 0
        %1914 = vmatpush1.bf16.msra.mxu0 0
        %1915 = vmatprep.subr.bf16.mxu0 0
        %1916 = vmatpush1.bf16.msra.mxu0 0
        %1917 = vmatprep.subr.bf16.mxu0 0
        %1918 = vmatpush1.bf16.msra.mxu0 0
        %1919 = vmatprep.subr.bf16.mxu0 0
        %1920 = vmatpush1.bf16.msra.mxu0 0
        %1921 = vmatprep.subr.bf16.mxu0 0
        %1922 = vmatpush1.bf16.msra.mxu0 0
        %1923 = vmatprep.subr.bf16.mxu0 0
        %1924 = vmatpush1.bf16.msra.mxu0 0
        %1925 = vmatprep.subr.bf16.mxu0 0
        %1926 = vmatpush1.bf16.msra.mxu0 0
        %1927 = vmatprep.subr.bf16.mxu0 0
        %1928 = vmatpush1.bf16.msra.mxu0 0
        %1929 = vmatprep.subr.bf16.mxu0 0
        %1930 = vmatpush1.bf16.msra.mxu0 0
        %1931 = vmatprep.mubr.bf16.mxu0 0
        %1932 = vmatmul.mubr.bf16.gmra.mrb[0].mxu0 %v1894
        %v1933 = vpop.f32.mrb[0].mxu0
        %v1934 = vadd.f32 %v1882, %v1933
        %v1935 = vpop.f32.mrb[0].mxu0
        %v1936 = vpop.f32.mrb[0].mxu0
        %v1937 = vadd.f32 %v1882, %v1936
        %v1938 = vpop.f32.mrb[0].mxu0
        %1939 = vdwg.mxu0
        %v1940 = vmax.f32 %v1934, 0.0
        %v1941 = vmax.f32 %v1937, 0.0
        %v1942 = vld [vmem:[%s1] sm:$0xff]
        %v1944 = vsel %vm660, %v1942, 0
        %v1947 = vsel %vm660, %v1940, 0
        %v1950 = vsel %vm660, %v1941, 0
        %1952 = vmatprep.subr.mxu0 0.0
        %1953 = vmatpush1.xpose.msra.mxu0 %v1947
        %1954 = vmatprep.subr.mxu0 0.0
        %1955 = vmatpush1.xpose.msra.mxu0 %v1950
        %1956 = vmatprep.subr.mxu0 0.0
        %1957 = vmatpush1.xpose.msra.mxu0 0.0
        %1958 = vmatprep.subr.mxu0 0.0
        %1959 = vmatpush1.xpose.msra.mxu0 0.0
        %1960 = vmatprep.subr.mxu0 0.0
        %1961 = vmatpush1.xpose.msra.mxu0 0.0
        %1962 = vmatprep.subr.mxu0 0.0
        %1963 = vmatpush1.xpose.msra.mxu0 0.0
        %1964 = vmatprep.subr.mxu0 0.0
        %1965 = vmatpush1.xpose.msra.mxu0 0.0
        %1966 = vmatprep.subr.mxu0 0.0
        %1967 = vmatpush1.xpose.msra.mxu0 0.0
        %1968 = vmatprep.subr.mxu0 0.0
        %1969 = vmatpush1.xpose.msra.mxu0 0.0
        %1970 = vmatprep.subr.mxu0 0.0
        %1971 = vmatpush1.xpose.msra.mxu0 0.0
        %1972 = vmatprep.subr.mxu0 0.0
        %1973 = vmatpush1.xpose.msra.mxu0 0.0
        %1974 = vmatprep.subr.mxu0 0.0
        %1975 = vmatpush1.xpose.msra.mxu0 0.0
        %1976 = vmatprep.subr.mxu0 0.0
        %1977 = vmatpush1.xpose.msra.mxu0 0.0
        %1978 = vmatprep.subr.mxu0 0.0
        %1979 = vmatpush1.xpose.msra.mxu0 0.0
        %1980 = vmatprep.subr.mxu0 0.0
        %1981 = vmatpush1.xpose.msra.mxu0 0.0
        %1982 = vmatprep.subr.mxu0 0.0
        %1983 = vmatpush1.xpose.msra.mxu0 0.0
        %1984 = vmatprep.subr.mxu0 0.0
        %1985 = vmatpush1.xpose.msra.mxu0 0.0
        %1986 = vmatprep.subr.mxu0 0.0
        %1987 = vmatpush1.xpose.msra.mxu0 0.0
        %1988 = vmatprep.subr.mxu0 0.0
        %1989 = vmatpush1.xpose.msra.mxu0 0.0
        %1990 = vmatprep.subr.mxu0 0.0
        %1991 = vmatpush1.xpose.msra.mxu0 0.0
        %1992 = vmatprep.subr.mxu0 0.0
        %1993 = vmatpush1.xpose.msra.mxu0 0.0
        %1994 = vmatprep.subr.mxu0 0.0
        %1995 = vmatpush1.xpose.msra.mxu0 0.0
        %1996 = vmatprep.subr.mxu0 0.0
        %1997 = vmatpush1.xpose.msra.mxu0 0.0
        %1998 = vmatprep.subr.mxu0 0.0
        %1999 = vmatpush1.xpose.msra.mxu0 0.0
        %2000 = vmatprep.subr.mxu0 0.0
        %2001 = vmatpush1.xpose.msra.mxu0 0.0
        %2002 = vmatprep.subr.mxu0 0.0
        %2003 = vmatpush1.xpose.msra.mxu0 0.0
        %2004 = vmatprep.subr.mxu0 0.0
        %2005 = vmatpush1.xpose.msra.mxu0 0.0
        %2006 = vmatprep.subr.mxu0 0.0
        %2007 = vmatpush1.xpose.msra.mxu0 0.0
        %2008 = vmatprep.subr.mxu0 0.0
        %2009 = vmatpush1.xpose.msra.mxu0 0.0
        %2010 = vmatprep.subr.mxu0 0.0
        %2011 = vmatpush1.xpose.msra.mxu0 0.0
        %2012 = vmatprep.subr.mxu0 0.0
        %2013 = vmatpush1.xpose.msra.mxu0 0.0
        %2014 = vmatprep.subr.mxu0 0.0
        %2015 = vmatpush1.xpose.msra.mxu0 0.0
        %2016 = vmatprep.mubr.f32.mxu0 0.0
        %2017 = vmatmul.mubr.f32.gmra.mrb[0].mxu0 %v1944
        %v2018 = vpop.f32.mrb[0].mxu0
        %v2019 = vadd.f32 0.0, %v2018
        %v2020 = vpop.f32.mrb[0].mxu0
        %2021 = vdwg.mxu0
        %v2022 = vmul.f32 %v2019, 0.17677669
        %v2023 = vsel %vm666, %v2022, -inf
        %2024 = vmax.xlane.f32.xlu0 %v2023
        %v2025 = vpop.xlane.xlu0 %2024
        %v2026 = vsub.f32 %v2022, %v2025
        %v2027 = vmul.f32 %v2026, 1.442695
        %v2028 = vpow.pop %v2027
        %v2029 = vsel %vm666, %v2028, 0.0
        %2030 = vadd.xlane.f32.xlu0 %v2029
        %v2031 = vpop.xlane.xlu0 %2030
        %v2032 = vrcp.pop %v2031
        %v2033 = vmul.f32 %v2028, %v2032
        %2034 = vst.msk [vmem:[%s606] sm:$0xff] %vm666, %v2033
        %v2036 = vsel %vm666, %v2033, 0
        %2038 = vmatprep.subr.mxu0 0.0
        %2039 = vmatpush1.msra.mxu0 %v613
        %2040 = vmatprep.subr.mxu0 0.0
        %2041 = vmatpush1.msra.mxu0 %v614
        %2042 = vmatprep.subr.mxu0 0.0
        %2043 = vmatpush1.msra.mxu0 0.0
        %2044 = vmatprep.subr.mxu0 0.0
        %2045 = vmatpush1.msra.mxu0 0.0
        %2046 = vmatprep.subr.mxu0 0.0
        %2047 = vmatpush1.msra.mxu0 0.0
        %2048 = vmatprep.subr.mxu0 0.0
        %2049 = vmatpush1.msra.mxu0 0.0
        %2050 = vmatprep.subr.mxu0 0.0
        %2051 = vmatpush1.msra.mxu0 0.0
        %2052 = vmatprep.subr.mxu0 0.0
        %2053 = vmatpush1.msra.mxu0 0.0
        %2054 = vmatprep.subr.mxu0 0.0
        %2055 = vmatpush1.msra.mxu0 0.0
        %2056 = vmatprep.subr.mxu0 0.0
        %2057 = vmatpush1.msra.mxu0 0.0
        %2058 = vmatprep.subr.mxu0 0.0
        %2059 = vmatpush1.msra.mxu0 0.0
        %2060 = vmatprep.subr.mxu0 0.0
        %2061 = vmatpush1.msra.mxu0 0.0
        %2062 = vmatprep.subr.mxu0 0.0
        %2063 = vmatpush1.msra.mxu0 0.0
        %2064 = vmatprep.subr.mxu0 0.0
        %2065 = vmatpush1.msra.mxu0 0.0
        %2066 = vmatprep.subr.mxu0 0.0
        %2067 = vmatpush1.msra.mxu0 0.0
        %2068 = vmatprep.subr.mxu0 0.0
        %2069 = vmatpush1.msra.mxu0 0.0
        %2070 = vmatprep.subr.mxu0 0.0
        %2071 = vmatpush1.msra.mxu0 0.0
        %2072 = vmatprep.subr.mxu0 0.0
        %2073 = vmatpush1.msra.mxu0 0.0
        %2074 = vmatprep.subr.mxu0 0.0
        %2075 = vmatpush1.msra.mxu0 0.0
        %2076 = vmatprep.subr.mxu0 0.0
        %2077 = vmatpush1.msra.mxu0 0.0
        %2078 = vmatprep.subr.mxu0 0.0
        %2079 = vmatpush1.msra.mxu0 0.0
        %2080 = vmatprep.subr.mxu0 0.0
        %2081 = vmatpush1.msra.mxu0 0.0
        %2082 = vmatprep.subr.mxu0 0.0
        %2083 = vmatpush1.msra.mxu0 0.0
        %2084 = vmatprep.subr.mxu0 0.0
        %2085 = vmatpush1.msra.mxu0 0.0
        %2086 = vmatprep.subr.mxu0 0.0
        %2087 = vmatpush1.msra.mxu0 0.0
        %2088 = vmatprep.subr.mxu0 0.0
        %2089 = vmatpush1.msra.mxu0 0.0
        %2090 = vmatprep.subr.mxu0 0.0
        %2091 = vmatpush1.msra.mxu0 0.0
        %2092 = vmatprep.subr.mxu0 0.0
        %2093 = vmatpush1.msra.mxu0 0.0
        %2094 = vmatprep.subr.mxu0 0.0
        %2095 = vmatpush1.msra.mxu0 0.0
        %2096 = vmatprep.subr.mxu0 0.0
        %2097 = vmatpush1.msra.mxu0 0.0
        %2098 = vmatprep.subr.mxu0 0.0
        %2099 = vmatpush1.msra.mxu0 0.0
        %2100 = vmatprep.subr.mxu0 0.0
        %2101 = vmatpush1.msra.mxu0 0.0
        %2102 = vmatprep.mubr.f32.mxu0 0.0
        %2103 = vmatmul.mubr.f32.gmra.mrb[0].mxu0 %v2036
        %v2104 = vpop.f32.mrb[0].mxu0
        %v2105 = vadd.f32 0.0, %v2104
        %v2106 = vpop.f32.mrb[0].mxu0
        %2107 = vdwg.mxu0
        %2108 = vst.msk [vmem:[%s599] sm:$0xff] %vm660, %v2105
        %s2109 = sand.u32 %s428, 1
        %s2110 = scalar_lea.sflag [#allocation3], %s2109
        %s2111 = sand.u32 %s428, 1
        %s2112 = smul.addr %s2111, 8
        %s2113 = scalar_lea.vmem [#allocation2], %s2112
        %s2114 = sand.u32 %s454, 1
        %s2115 = scalar_lea.sflag [#allocation5], %s2114
        %s2116 = sand.u32 %s454, 1
        %s2117 = smul.addr %s2116, 8
        %s2118 = scalar_lea.vmem [#allocation4], %s2117
        // Predicated region
        $region93: #{position_attention_forward.1} parent=91 // pred_check
          %p2119 = pneg %p438
        $region94: #{position_attention_forward.1} parent=91 // pred_check_branch
          %2121 = sbr.rel (%p2119) target = $region96
        $region95: #{position_attention_forward.1} parent=91 // pred_region
          %s2123 = ssub.s32 128, 128
          %2124 = vsyncadd %s2110, %s2123
          %s2125 = smul.addr %s37, 128
          %s2126 = scalar_lea.hbm %s18, %s2125
          %s2128 = sshll.u32 %s2113, 4
          %s2129 = int_to_ptr.vmem [resolvable:$true] %s2128
          %2131 = dma.vmem_to_hbm [thread:$0]  %s2129, 128, %s2126, %s2110
        $region96: #{position_attention_forward.1} parent=91 // pred_fallthru
          _
        // Predicated region
        $region97: #{position_attention_forward.1} parent=91 // pred_check
          %p2132 = pneg %p464
        $region98: #{position_attention_forward.1} parent=91 // pred_check_branch
          %2134 = sbr.rel (%p2132) target = $region100
        $region99: #{position_attention_forward.1} parent=91 // pred_region
          %s2136 = ssub.s32 128, 128
          %2137 = vsyncadd %s2115, %s2136
          %s2138 = smul.addr %s37, 128
          %s2139 = scalar_lea.hbm %s19, %s2138
          %s2141 = sshll.u32 %s2118, 4
          %s2142 = int_to_ptr.vmem [resolvable:$true] %s2141
          %2144 = dma.vmem_to_hbm [thread:$0]  %s2142, 128, %s2139, %s2115
        $region100: #{position_attention_forward.1} parent=91 // pred_fallthru
          _
      $region92: #{position_attention_forward.1} parent=5 // pred_fallthru
        _
      %p2145 = scmp.le.s32.totalorder 2, %s32
      // Predicated region
      $region101: #{position_attention_forward.1} parent=5 // pred_check
        %p2146 = pneg %p2145
      $region102: #{position_attention_forward.1} parent=5 // pred_check_branch
        %2148 = sbr.rel (%p2146) target = $region104
      $region103: #{position_attention_forward.1} parent=5 // pred_region
        %s2149 = ssub.s32 %s32, 2
        // Predicated region
        $region105: #{position_attention_forward.1} parent=103 // pred_check
          %p2150 = pneg %p444
        $region106: #{position_attention_forward.1} parent=103 // pred_check_branch
          %2152 = sbr.rel (%p2150) target = $region108
        $region107: #{position_attention_forward.1} parent=103 // pred_region
          %s2153 = sand.u32 %s429, 1
          %s2154 = scalar_lea.sflag [#allocation3], %s2153
          %s2155 = sand.u32 %s429, 1
          %s2156 = smul.addr %s2155, 8
          %s2157 = scalar_lea.vmem [#allocation2], %s2156
          %2158 = dma.done %s2154, 128
        $region108: #{position_attention_forward.1} parent=103 // pred_fallthru
          _
        // Predicated region
        $region109: #{position_attention_forward.1} parent=103 // pred_check
          %p2159 = pneg %p470
        $region110: #{position_attention_forward.1} parent=103 // pred_check_branch
          %2161 = sbr.rel (%p2159) target = $region112
        $region111: #{position_attention_forward.1} parent=103 // pred_region
          %s2162 = sand.u32 %s455, 1
          %s2163 = scalar_lea.sflag [#allocation5], %s2162
          %s2164 = sand.u32 %s455, 1
          %s2165 = smul.addr %s2164, 8
          %s2166 = scalar_lea.vmem [#allocation4], %s2165
          %2167 = dma.done %s2163, 128
        $region112: #{position_attention_forward.1} parent=103 // pred_fallthru
          _
      $region104: #{position_attention_forward.1} parent=5 // pred_fallthru
        _
    $region6: #{position_attention_forward.1} parent=1 // loop_footer
      %s36 = sadd.s32 1, %s32
    $region7: #{position_attention_forward.1} parent=1 // loop_footer_branch
      %31 = sbr.rel target = $region3
    $region8: #{position_attention_forward.1} parent=1 // loop_exit
      _
    %2168 = vsyncpa [#allocation3], 1
    %s2169 = scalar_lea.sflag [#allocation3], 1
    %2170 = vsyncpa %s2169, 1
    %2171 = vsyncpa [#allocation5], 1
    %s2172 = scalar_lea.sflag [#allocation5], 1
    %2173 = vsyncpa %s2172, 1

</llo_original>
